<compile_context>
chip_gen: v7x
topology: tpu7x:2x2x1
jax: 0.10.0
libtpu: 0.0.40
codegen_flags: <defaults>
</compile_context>

<pallas_src>
import functools

import jax
import jax.numpy as jnp
from jax.experimental import pallas as pl
from jax.experimental.pallas import tpu as pltpu

CONV_STRIDES = (4, 2, 1)   # static conv strides (kept out of the param pytree)
TM_MAX = 512               # M-tile cap: fits v5e/v6e/v7x VMEM with bf16 tiles
LANE = 128                 # TPU lane width: pad matmul N/K dims to this


def _cdiv(a, b):
    return (a + b - 1) // b


def _round_up(x, m):
    return _cdiv(x, m) * m


# ----------------------------- Pallas kernel ------------------------------ #
def _chain_kernel(*refs, relus):
    """refs = (x_ref, w0_ref, b0_ref, w1_ref, b1_ref, ..., o_ref).

    h = x; for each layer i: h = [relu](h @ w_i + b_i); store h.
    Activations arrive as bf16 (no per-tile cast for layer 0); intermediate
    f32 accumulators are cast back to bf16 only for the next MXU pass.
    f32 accumulation, f32 bias/ReLU on the VPU (v5e-safe).
    Weights/biases are whole-array VMEM residents; only x/o are M-tiled.
    """
    x_ref, o_ref = refs[0], refs[-1]
    h = x_ref[...]
    for i, relu in enumerate(relus):
        w_ref = refs[1 + 2 * i]
        b_ref = refs[2 + 2 * i]
        lhs = h if h.dtype == jnp.bfloat16 else h.astype(jnp.bfloat16)
        acc = jnp.dot(lhs, w_ref[...], preferred_element_type=jnp.float32)
        acc = acc + b_ref[...]
        if relu:
            acc = jnp.maximum(acc, 0.0)
        h = acc
    o_ref[...] = h.astype(o_ref.dtype)


def pallas_layer_chain(x, layers, *, out_dtype=jnp.float32, tm_max=TM_MAX):
    """Fused y = layer_n(...layer_1(x)...) in ONE pallas_call.

    x: (M, K0).  layers: list of (w (K, N) f32, b (N,) f32, relu bool), each K
    equal to the previous layer's (unpadded) N.  Returns (M, N_last) out_dtype.
    Zero-padded weight rows/cols and bias keep padded channels exactly zero,
    so results are exact.
    """
    M, K0 = x.shape
    x = x.astype(jnp.bfloat16)                 # activations travel as bf16

    # Lane-dense K for the activation tile.
    k_pad = _round_up(K0, LANE)
    if k_pad != K0:
        x = jnp.pad(x, ((0, 0), (0, k_pad - K0)))

    # Balanced row tiling: minimize zero-row padding and guarantee >= 2
    # parallel grid steps (both v7x TensorCores) whenever M allows (>= 16).
    m8 = _round_up(max(M, 8), 8)
    n_tiles = _cdiv(m8, tm_max)
    if m8 >= 16:
        n_tiles = max(n_tiles, 2)
    tm = _round_up(_cdiv(m8, n_tiles), 8)
    m_pad = tm * n_tiles
    if m_pad != M:
        x = jnp.pad(x, ((0, m_pad - M), (0, 0)))

    operands = [x]
    in_specs = [pl.BlockSpec((tm, k_pad), lambda i: (i, 0))]
    relus = []
    k_real, k_padded = K0, k_pad
    vmem_bytes = 2 * tm * k_pad * 2                  # double-buffered x (bf16)
    for w, b, relu in layers:
        K, N = w.shape
        assert K == k_real, (K, k_real)
        n_padded = _round_up(N, LANE)
        w_p = jnp.pad(w, ((0, k_padded - K), (0, n_padded - N)))
        b_p = jnp.pad(b, (0, n_padded - N)).reshape(1, n_padded)
        operands += [w_p.astype(jnp.bfloat16), b_p.astype(jnp.float32)]
        in_specs += [pl.BlockSpec((k_padded, n_padded), lambda i: (0, 0)),
                     pl.BlockSpec((1, n_padded), lambda i: (0, 0))]
        relus.append(bool(relu))
        vmem_bytes += 2 * (k_padded * n_padded * 2 + n_padded * 4)  # w + b
        vmem_bytes += tm * n_padded * 4                             # f32 temp
        k_real, k_padded = N, n_padded

    n_last, n_last_padded = layers[-1][0].shape[1], k_padded
    vmem_bytes += 2 * tm * n_last_padded * jnp.dtype(out_dtype).itemsize

    # Explicit scoped-VMEM limit: >= 32 MiB (v5e scoped default is ~16 MiB),
    # sized from the real footprint with headroom, capped well under v7x's
    # 64 MiB physical VMEM.
    vmem_limit = int(min(max(2 * vmem_bytes, 32 << 20), 56 << 20))

    out = pl.pallas_call(
        functools.partial(_chain_kernel, relus=tuple(relus)),
        out_shape=jax.ShapeDtypeStruct((m_pad, n_last_padded), out_dtype),
        grid=(n_tiles,),
        in_specs=in_specs,
        out_specs=pl.BlockSpec((tm, n_last_padded), lambda i: (i, 0)),
        compiler_params=pltpu.CompilerParams(
            dimension_semantics=("parallel",),
            vmem_limit_bytes=vmem_limit),
    )(*operands)
    # Lazy slice: under jit XLA fuses this into the consumer (no forced copy).
    return out[:M, :n_last]


# ------------------------------ JAX glue ---------------------------------- #
def extract_patches(x, K, stride):
    """im2col: x (N, H, W, C) -> (N, Ho, Wo, K*K*C), feature order (kh, kw, c)
    to match the (Kh, Kw, Cin, Cout)-reshaped conv weight.  Pure gather glue
    (no compute); runs on bf16 activations so it moves half the HBM bytes."""
    # TODO(synk): fold the kh/kw shifts into the kernel as K*K accumulated
    # matmuls to avoid materializing the K^2-duplicated patch tensor at all.
    N, H, W, C = x.shape
    Ho = (H - K) // stride + 1
    Wo = (W - K) // stride + 1
    cols = []
    for kh in range(K):
        for kw in range(K):
            cols.append(x[:, kh:kh + stride * Ho:stride,
                           kw:kw + stride * Wo:stride, :])
    patches = jnp.stack(cols, axis=3)            # (N, Ho, Wo, K*K, C)
    return patches.reshape(N, Ho, Wo, K * K * C), Ho, Wo


def dqn_forward(params, x_nchw):
    """Forward pass. x_nchw: (N, C, H, W) -> (N, n_actions) float32."""
    # NHWC + bf16 once; all activation traffic (im2col, kernel I/O) is bf16.
    x = jnp.transpose(x_nchw, (0, 2, 3, 1)).astype(jnp.bfloat16)
    B = x.shape[0]
    convs = params["conv"]
    w1, b1 = params["fc1"]
    w2, b2 = params["fc2"]

    for li, ((w, b), stride) in enumerate(zip(convs, CONV_STRIDES)):
        Cout, Cin, K, _ = w.shape
        patches, Ho, Wo = extract_patches(x, K, stride)
        flat = patches.reshape(B * Ho * Wo, K * K * Cin)
        w_mat = jnp.transpose(w, (2, 3, 1, 0)).reshape(K * K * Cin, Cout)

        if li == len(convs) - 1 and Ho == 1 and Wo == 1:
            # conv3 output is 1x1 spatial: channel-major flatten is trivial,
            # so fuse conv3 + fc1 + fc2 into a single Pallas kernel.
            return pallas_layer_chain(
                flat,
                [(w_mat, b, True), (w1.T, b1, True), (w2.T, b2, False)],
                out_dtype=jnp.float32)

        # conv + bias + ReLU; intermediate activations stay bf16 in HBM.
        y = pallas_layer_chain(flat, [(w_mat, b, True)],
                               out_dtype=jnp.bfloat16)
        x = y.reshape(B, Ho, Wo, Cout)

    # General path: fold PyTorch's channel-major (C,H,W) flatten into a row
    # permutation of fc1's weight (no activation transpose); fuse fc1 + fc2.
    _, H3, W3, C3 = x.shape
    feat = x.reshape(B, H3 * W3 * C3)                       # NHWC-flat
    hidden = w1.shape[0]
    w1_mat = jnp.transpose(w1.reshape(hidden, C3, H3, W3),
                           (2, 3, 1, 0)).reshape(H3 * W3 * C3, hidden)
    return pallas_layer_chain(feat, [(w1_mat, b1, True), (w2.T, b2, False)],
                              out_dtype=jnp.float32)


# ----------------------- deterministic parameter init --------------------- #
def init_dqn_params(key, input_shape, n_actions):
    def uniform(k, shape, fan_in):
        bound = 1.0 / (fan_in ** 0.5)
        return jax.random.uniform(k, shape, jnp.float32, -bound, bound)

    c_in, H, W = input_shape
    cfg = [(c_in, 32, 8), (32, 64, 4), (64, 64, 3)]
    keys = jax.random.split(key, 2 * len(cfg) + 4)
    ki = 0

    conv = []
    for (ci, co, k) in cfg:
        fan_in = ci * k * k
        w = uniform(keys[ki], (co, ci, k, k), fan_in); ki += 1
        b = uniform(keys[ki], (co,), fan_in); ki += 1
        conv.append((w, b))

    h, w_ = H, W
    for (ci, co, k), s in zip(cfg, CONV_STRIDES):
        h = (h - k) // s + 1
        w_ = (w_ - k) // s + 1
    conv_out = cfg[-1][1] * h * w_

    fc1_w = uniform(keys[ki], (512, conv_out), conv_out); ki += 1
    fc1_b = uniform(keys[ki], (512,), conv_out); ki += 1
    fc2_w = uniform(keys[ki], (n_actions, 512), 512); ki += 1
    fc2_b = uniform(keys[ki], (n_actions,), 512); ki += 1

    return {"conv": conv, "fc1": (fc1_w, fc1_b), "fc2": (fc2_w, fc2_b)}


# ------------------------- pure-JAX reference check ------------------------ #
def dqn_forward_ref(params, x_nchw):
    x = x_nchw.astype(jnp.float32)
    for (w, b), stride in zip(params["conv"], CONV_STRIDES):
        x = jax.lax.conv_general_dilated(
            x, w, window_strides=(stride, stride), padding="VALID",
            dimension_numbers=("NCHW", "OIHW", "NCHW"),
            precision=jax.lax.Precision.HIGHEST)
        x = jnp.maximum(x + b.reshape(1, -1, 1, 1), 0.0)
    feat = x.reshape(x.shape[0], -1)
    w1, b1 = params["fc1"]
    w2, b2 = params["fc2"]
    h = jnp.maximum(
        jnp.dot(feat, w1.T, precision=jax.lax.Precision.HIGHEST) + b1, 0.0)
    return jnp.dot(h, w2.T, precision=jax.lax.Precision.HIGHEST) + b2


# ---------------------------------- main ----------------------------------- #
if __name__ == "__main__":
    input_shape = (4, 36, 36)   # (C, H, W): smallest spatial surviving 3 convs
    n_actions = 6
    batch = 2

    key = jax.random.PRNGKey(0)
    pkey, xkey = jax.random.split(key)
    params = init_dqn_params(pkey, input_shape, n_actions)
    x = jax.random.normal(xkey, (batch,) + input_shape, dtype=jnp.float32)

    q = jax.jit(dqn_forward)(params, x)
    q = jax.block_until_ready(q)

    assert q.shape == (batch, n_actions), q.shape
    assert bool(jnp.all(jnp.isfinite(q)))

    q_ref = dqn_forward_ref(params, x)
    assert bool(jnp.allclose(q, q_ref, atol=2e-2, rtol=2e-2)), (
        float(jnp.max(jnp.abs(q - q_ref))))

    print("KERNEL_OK")
</pallas_src>

<mosaic_0001>
module attributes {stable_mosaic.version = 11 : i64} {
  func.func @_chain_kernel(%arg0: i32, %arg1: memref<64x256xbf16, #tpu.memory_space<vmem>>, %arg2: memref<256x128xbf16, #tpu.memory_space<vmem>>, %arg3: memref<1x128xf32, #tpu.memory_space<vmem>>, %arg4: memref<64x128xbf16, #tpu.memory_space<vmem>>) attributes {dimension_semantics = [#tpu.dimension_semantics<parallel>], iteration_bounds = array<i64: 2>, scalar_prefetch = 0 : i64, scratch_operands = 0 : i64, tpu.core_type = #tpu.core_type<tc>, window_params = [{transform_indices = @transform_0, window_bounds = array<i64: 64, 256>}, {pipeline_mode = #tpu.pipeline_mode<synchronous>, transform_indices = @transform_1, window_bounds = array<i64: 256, 128>}, {pipeline_mode = #tpu.pipeline_mode<synchronous>, transform_indices = @transform_2, window_bounds = array<i64: 1, 128>}, {transform_indices = @transform_3, window_bounds = array<i64: 64, 128>}]} {
    %c0 = arith.constant 0 : index
    %c0_0 = arith.constant 0 : index
    %0 = vector.load %arg1[%c0, %c0_0] : memref<64x256xbf16, #tpu.memory_space<vmem>>, vector<64x256xbf16>
    %c0_1 = arith.constant 0 : index
    %c0_2 = arith.constant 0 : index
    %1 = vector.load %arg2[%c0_1, %c0_2] : memref<256x128xbf16, #tpu.memory_space<vmem>>, vector<256x128xbf16>
    %cst = arith.constant dense<0.000000e+00> : vector<64x128xf32>
    %2 = tpu.matmul %0, %1, %cst {dimension_numbers = #tpu.dot_dimension_numbers<[1], [0], [0], [1], [0, 0, 1, 1], [], []>} : vector<64x256xbf16>, vector<256x128xbf16>, vector<64x128xf32> -> vector<64x128xf32>
    %c0_3 = arith.constant 0 : index
    %c0_4 = arith.constant 0 : index
    %3 = vector.load %arg3[%c0_3, %c0_4] : memref<1x128xf32, #tpu.memory_space<vmem>>, vector<1x128xf32>
    %4 = vector.broadcast %3 : vector<1x128xf32> to vector<64x128xf32>
    %5 = arith.addf %2, %4 : vector<64x128xf32>
    %cst_5 = arith.constant 0.000000e+00 : f32
    %6 = vector.broadcast %cst_5 : f32 to vector<64x128xf32>
    %7 = arith.maximumf %5, %6 : vector<64x128xf32>
    %8 = arith.truncf %7 : vector<64x128xf32> to vector<64x128xbf16>
    %c0_6 = arith.constant 0 : index
    %c0_7 = arith.constant 0 : index
    %9 = vector.load %arg4[%c0_6, %c0_7] : memref<64x128xbf16, #tpu.memory_space<vmem>>, vector<64x128xbf16>
    tpu.vector_store %arg4[%c0_6, %c0_7], %8 {strides = array<i32>} : memref<64x128xbf16, #tpu.memory_space<vmem>>, vector<64x128xbf16>,
    return
  }
  func.func @transform_0(%arg0: i32) -> (i32, i32) {
    %c0_i32 = arith.constant 0 : i32
    %c0_i32_0 = arith.constant 0 : i32
    return %arg0, %c0_i32 : i32, i32
  }
  func.func @transform_1(%arg0: i32) -> (i32, i32) {
    %c0_i32 = arith.constant 0 : i32
    %c0_i32_0 = arith.constant 0 : i32
    %c0_i32_1 = arith.constant 0 : i32
    return %c0_i32, %c0_i32_0 : i32, i32
  }
  func.func @transform_2(%arg0: i32) -> (i32, i32) {
    %c0_i32 = arith.constant 0 : i32
    %c0_i32_0 = arith.constant 0 : i32
    %c0_i32_1 = arith.constant 0 : i32
    return %c0_i32, %c0_i32_0 : i32, i32
  }
  func.func @transform_3(%arg0: i32) -> (i32, i32) {
    %c0_i32 = arith.constant 0 : i32
    %c0_i32_0 = arith.constant 0 : i32
    return %arg0, %c0_i32 : i32, i32
  }
}

module attributes {stable_mosaic.version = 11 : i64} {
  func.func @_chain_kernel(%arg0: i32, %arg1: memref<16x512xbf16, #tpu.memory_space<vmem>>, %arg2: memref<512x128xbf16, #tpu.memory_space<vmem>>, %arg3: memref<1x128xf32, #tpu.memory_space<vmem>>, %arg4: memref<16x128xbf16, #tpu.memory_space<vmem>>) attributes {dimension_semantics = [#tpu.dimension_semantics<parallel>], iteration_bounds = array<i64: 2>, scalar_prefetch = 0 : i64, scratch_operands = 0 : i64, tpu.core_type = #tpu.core_type<tc>, window_params = [{transform_indices = @transform_0, window_bounds = array<i64: 16, 512>}, {pipeline_mode = #tpu.pipeline_mode<synchronous>, transform_indices = @transform_1, window_bounds = array<i64: 512, 128>}, {pipeline_mode = #tpu.pipeline_mode<synchronous>, transform_indices = @transform_2, window_bounds = array<i64: 1, 128>}, {transform_indices = @transform_3, window_bounds = array<i64: 16, 128>}]} {
    %c0 = arith.constant 0 : index
    %c0_0 = arith.constant 0 : index
    %0 = vector.load %arg1[%c0, %c0_0] : memref<16x512xbf16, #tpu.memory_space<vmem>>, vector<16x512xbf16>
    %c0_1 = arith.constant 0 : index
    %c0_2 = arith.constant 0 : index
    %1 = vector.load %arg2[%c0_1, %c0_2] : memref<512x128xbf16, #tpu.memory_space<vmem>>, vector<512x128xbf16>
    %cst = arith.constant dense<0.000000e+00> : vector<16x128xf32>
    %2 = tpu.matmul %0, %1, %cst {dimension_numbers = #tpu.dot_dimension_numbers<[1], [0], [0], [1], [0, 0, 1, 1], [], []>} : vector<16x512xbf16>, vector<512x128xbf16>, vector<16x128xf32> -> vector<16x128xf32>
    %c0_3 = arith.constant 0 : index
    %c0_4 = arith.constant 0 : index
    %3 = vector.load %arg3[%c0_3, %c0_4] : memref<1x128xf32, #tpu.memory_space<vmem>>, vector<1x128xf32>
    %4 = vector.broadcast %3 : vector<1x128xf32> to vector<16x128xf32>
    %5 = arith.addf %2, %4 : vector<16x128xf32>
    %cst_5 = arith.constant 0.000000e+00 : f32
    %6 = vector.broadcast %cst_5 : f32 to vector<16x128xf32>
    %7 = arith.maximumf %5, %6 : vector<16x128xf32>
    %8 = arith.truncf %7 : vector<16x128xf32> to vector<16x128xbf16>
    %c0_6 = arith.constant 0 : index
    %c0_7 = arith.constant 0 : index
    %9 = vector.load %arg4[%c0_6, %c0_7] : memref<16x128xbf16, #tpu.memory_space<vmem>>, vector<16x128xbf16>
    tpu.vector_store %arg4[%c0_6, %c0_7], %8 {strides = array<i32>} : memref<16x128xbf16, #tpu.memory_space<vmem>>, vector<16x128xbf16>,
    return
  }
  func.func @transform_0(%arg0: i32) -> (i32, i32) {
    %c0_i32 = arith.constant 0 : i32
    %c0_i32_0 = arith.constant 0 : i32
    return %arg0, %c0_i32 : i32, i32
  }
  func.func @transform_1(%arg0: i32) -> (i32, i32) {
    %c0_i32 = arith.constant 0 : i32
    %c0_i32_0 = arith.constant 0 : i32
    %c0_i32_1 = arith.constant 0 : i32
    return %c0_i32, %c0_i32_0 : i32, i32
  }
  func.func @transform_2(%arg0: i32) -> (i32, i32) {
    %c0_i32 = arith.constant 0 : i32
    %c0_i32_0 = arith.constant 0 : i32
    %c0_i32_1 = arith.constant 0 : i32
    return %c0_i32, %c0_i32_0 : i32, i32
  }
  func.func @transform_3(%arg0: i32) -> (i32, i32) {
    %c0_i32 = arith.constant 0 : i32
    %c0_i32_0 = arith.constant 0 : i32
    return %arg0, %c0_i32 : i32, i32
  }
}

module attributes {stable_mosaic.version = 11 : i64} {
  func.func @_chain_kernel(%arg0: i32, %arg1: memref<8x640xbf16, #tpu.memory_space<vmem>>, %arg2: memref<640x128xbf16, #tpu.memory_space<vmem>>, %arg3: memref<1x128xf32, #tpu.memory_space<vmem>>, %arg4: memref<128x512xbf16, #tpu.memory_space<vmem>>, %arg5: memref<1x512xf32, #tpu.memory_space<vmem>>, %arg6: memref<512x128xbf16, #tpu.memory_space<vmem>>, %arg7: memref<1x128xf32, #tpu.memory_space<vmem>>, %arg8: memref<8x128xf32, #tpu.memory_space<vmem>>) attributes {dimension_semantics = [#tpu.dimension_semantics<parallel>], iteration_bounds = array<i64: 1>, scalar_prefetch = 0 : i64, scratch_operands = 0 : i64, tpu.core_type = #tpu.core_type<tc>, window_params = [{transform_indices = @transform_0, window_bounds = array<i64: 8, 640>}, {pipeline_mode = #tpu.pipeline_mode<synchronous>, transform_indices = @transform_1, window_bounds = array<i64: 640, 128>}, {pipeline_mode = #tpu.pipeline_mode<synchronous>, transform_indices = @transform_2, window_bounds = array<i64: 1, 128>}, {pipeline_mode = #tpu.pipeline_mode<synchronous>, transform_indices = @transform_3, window_bounds = array<i64: 128, 512>}, {pipeline_mode = #tpu.pipeline_mode<synchronous>, transform_indices = @transform_4, window_bounds = array<i64: 1, 512>}, {pipeline_mode = #tpu.pipeline_mode<synchronous>, transform_indices = @transform_5, window_bounds = array<i64: 512, 128>}, {pipeline_mode = #tpu.pipeline_mode<synchronous>, transform_indices = @transform_6, window_bounds = array<i64: 1, 128>}, {transform_indices = @transform_7, window_bounds = array<i64: 8, 128>}]} {
    %c0 = arith.constant 0 : index
    %c0_0 = arith.constant 0 : index
    %0 = vector.load %arg1[%c0, %c0_0] : memref<8x640xbf16, #tpu.memory_space<vmem>>, vector<8x640xbf16>
    %c0_1 = arith.constant 0 : index
    %c0_2 = arith.constant 0 : index
    %1 = vector.load %arg2[%c0_1, %c0_2] : memref<640x128xbf16, #tpu.memory_space<vmem>>, vector<640x128xbf16>
    %cst = arith.constant dense<0.000000e+00> : vector<8x128xf32>
    %2 = tpu.matmul %0, %1, %cst {dimension_numbers = #tpu.dot_dimension_numbers<[1], [0], [0], [1], [0, 0, 1, 1], [], []>} : vector<8x640xbf16>, vector<640x128xbf16>, vector<8x128xf32> -> vector<8x128xf32>
    %c0_3 = arith.constant 0 : index
    %c0_4 = arith.constant 0 : index
    %3 = vector.load %arg3[%c0_3, %c0_4] : memref<1x128xf32, #tpu.memory_space<vmem>>, vector<1x128xf32>
    %4 = vector.broadcast %3 : vector<1x128xf32> to vector<8x128xf32>
    %5 = arith.addf %2, %4 : vector<8x128xf32>
    %cst_5 = arith.constant 0.000000e+00 : f32
    %6 = vector.broadcast %cst_5 : f32 to vector<8x128xf32>
    %7 = arith.maximumf %5, %6 : vector<8x128xf32>
    %8 = arith.truncf %7 : vector<8x128xf32> to vector<8x128xbf16>
    %c0_6 = arith.constant 0 : index
    %c0_7 = arith.constant 0 : index
    %9 = vector.load %arg4[%c0_6, %c0_7] : memref<128x512xbf16, #tpu.memory_space<vmem>>, vector<128x512xbf16>
    %cst_8 = arith.constant dense<0.000000e+00> : vector<8x512xf32>
    %10 = tpu.matmul %8, %9, %cst_8 {dimension_numbers = #tpu.dot_dimension_numbers<[1], [0], [0], [1], [0, 0, 1, 1], [], []>} : vector<8x128xbf16>, vector<128x512xbf16>, vector<8x512xf32> -> vector<8x512xf32>
    %c0_9 = arith.constant 0 : index
    %c0_10 = arith.constant 0 : index
    %11 = vector.load %arg5[%c0_9, %c0_10] : memref<1x512xf32, #tpu.memory_space<vmem>>, vector<1x512xf32>
    %12 = vector.broadcast %11 : vector<1x512xf32> to vector<8x512xf32>
    %13 = arith.addf %10, %12 : vector<8x512xf32>
    %cst_11 = arith.constant 0.000000e+00 : f32
    %14 = vector.broadcast %cst_11 : f32 to vector<8x512xf32>
    %15 = arith.maximumf %13, %14 : vector<8x512xf32>
    %16 = arith.truncf %15 : vector<8x512xf32> to vector<8x512xbf16>
    %c0_12 = arith.constant 0 : index
    %c0_13 = arith.constant 0 : index
    %17 = vector.load %arg6[%c0_12, %c0_13] : memref<512x128xbf16, #tpu.memory_space<vmem>>, vector<512x128xbf16>
    %cst_14 = arith.constant dense<0.000000e+00> : vector<8x128xf32>
    %18 = tpu.matmul %16, %17, %cst_14 {dimension_numbers = #tpu.dot_dimension_numbers<[1], [0], [0], [1], [0, 0, 1, 1], [], []>} : vector<8x512xbf16>, vector<512x128xbf16>, vector<8x128xf32> -> vector<8x128xf32>
    %c0_15 = arith.constant 0 : index
    %c0_16 = arith.constant 0 : index
    %19 = vector.load %arg7[%c0_15, %c0_16] : memref<1x128xf32, #tpu.memory_space<vmem>>, vector<1x128xf32>
    %20 = vector.broadcast %19 : vector<1x128xf32> to vector<8x128xf32>
    %21 = arith.addf %18, %20 : vector<8x128xf32>
    %c0_17 = arith.constant 0 : index
    %c0_18 = arith.constant 0 : index
    %22 = vector.load %arg8[%c0_17, %c0_18] : memref<8x128xf32, #tpu.memory_space<vmem>>, vector<8x128xf32>
    tpu.vector_store %arg8[%c0_17, %c0_18], %21 {strides = array<i32>} : memref<8x128xf32, #tpu.memory_space<vmem>>, vector<8x128xf32>,
    return
  }
  func.func @transform_0(%arg0: i32) -> (i32, i32) {
    %c0_i32 = arith.constant 0 : i32
    %c0_i32_0 = arith.constant 0 : i32
    return %arg0, %c0_i32 : i32, i32
  }
  func.func @transform_1(%arg0: i32) -> (i32, i32) {
    %c0_i32 = arith.constant 0 : i32
    %c0_i32_0 = arith.constant 0 : i32
    %c0_i32_1 = arith.constant 0 : i32
    return %c0_i32, %c0_i32_0 : i32, i32
  }
  func.func @transform_2(%arg0: i32) -> (i32, i32) {
    %c0_i32 = arith.constant 0 : i32
    %c0_i32_0 = arith.constant 0 : i32
    %c0_i32_1 = arith.constant 0 : i32
    return %c0_i32, %c0_i32_0 : i32, i32
  }
  func.func @transform_3(%arg0: i32) -> (i32, i32) {
    %c0_i32 = arith.constant 0 : i32
    %c0_i32_0 = arith.constant 0 : i32
    %c0_i32_1 = arith.constant 0 : i32
    return %c0_i32, %c0_i32_0 : i32, i32
  }
  func.func @transform_4(%arg0: i32) -> (i32, i32) {
    %c0_i32 = arith.constant 0 : i32
    %c0_i32_0 = arith.constant 0 : i32
    %c0_i32_1 = arith.constant 0 : i32
    return %c0_i32, %c0_i32_0 : i32, i32
  }
  func.func @transform_5(%arg0: i32) -> (i32, i32) {
    %c0_i32 = arith.constant 0 : i32
    %c0_i32_0 = arith.constant 0 : i32
    %c0_i32_1 = arith.constant 0 : i32
    return %c0_i32, %c0_i32_0 : i32, i32
  }
  func.func @transform_6(%arg0: i32) -> (i32, i32) {
    %c0_i32 = arith.constant 0 : i32
    %c0_i32_0 = arith.constant 0 : i32
    %c0_i32_1 = arith.constant 0 : i32
    return %c0_i32, %c0_i32_0 : i32, i32
  }
  func.func @transform_7(%arg0: i32) -> (i32, i32) {
    %c0_i32 = arith.constant 0 : i32
    %c0_i32_0 = arith.constant 0 : i32
    return %arg0, %c0_i32 : i32, i32
  }
}

</mosaic_0001>

<llo_original>
// kernel: dqn_forward.3
$region0: #{dqn_forward.3}
  #allocation0 [shape = 'u32[]', space=smem, size = 0x4, offset = 0x4, fixed_abs, tag = 'smem constant byte address 0x4 - core index']
  #allocation1 [shape = 'u32[144,128]{1,0:T(1,128)}', space=vmem, size = 0x12000, scoped, tag = 'internal scratch']
  %s0 = inlined_call_operand.vmem [shape: bf16[128,256], index: 0, kind: input, shape index: {}]
  %s1 = inlined_call_operand.vmem [shape: bf16[256,128], index: 1, kind: input, shape index: {}]
  %s2 = inlined_call_operand.vmem [shape: f32[1,128], index: 2, kind: input, shape index: {}]
  %s3 = inlined_call_operand.vmem [shape: bf16[128,128], index: 3, kind: output, shape index: {}]
  %s4 = sld [smem:[#allocation0]]
  $region45: #{dqn_forward.3} parent=0
    _
  %s6 = ssub.s32 1, %s4
  %s7 = scalar_select 0, %s6, %s4
  loop: start=0, step=1, limit=4
  $region2: #{dqn_forward.3} parent=0 // loop_pre_header
    _
  $region3: #{dqn_forward.3} parent=0 // loop_header
    %s9 = sphi 0, %s13
    %p10 = scmp.ge.s32.totalorder %s9, 4
    %s19 = sphi 0, %s21
    %s22 = sphi 0, %s19
    %s23 = sphi 0, %s22
    %s39 = sphi 0, %s23
    %s43 = sphi 0, %s43
    %s45 = sphi 0, %s43
    %s46 = sphi 0, %s45
    %s60 = sphi 0, %s46
    %s64 = sphi 0, %s64
    %s66 = sphi 0, %s64
    %s67 = sphi 0, %s66
    %s81 = sphi 0, %s67
    %s87 = sphi 0, %s89
    %s90 = sphi 0, %s87
    %s91 = sphi 0, %s90
    %s107 = sphi 0, %s91
  $region4: #{dqn_forward.3} parent=0 // loop_header_branch
    %12 = sbr.rel (%p10) target = $region8
  $region5: #{dqn_forward.3} parent=0 // loop_body
    %s14 = ssub.s32 %s9, 1
    %s15 = ssub.s32 %s9, 2
    %s16 = sadd.s32 %s9, 1
    %s17 = ssub.s32 %s9, %s16
    %p18 = scmp.eq.s32.totalorder %s17, 0
    %s20 = sadd.s32 %s19, 1
    %s21 = scalar_select %p18, %s19, %s20
    %p24 = pneg %p18
    %p25 = scmp.eq.s32.totalorder %s9, 1
    %p26 = por %p24, %p25
    %p27 = scmp.ne.s32.totalorder %s19, %s22
    %p28 = scmp.eq.s32.totalorder %s9, 0
    %p29 = por %p27, %p28
    %p30 = scmp.ne.s32.totalorder %s19, %s22
    %p31 = scmp.eq.s32.totalorder %s14, 1
    %p32 = por %p30, %p31
    %p33 = scmp.ne.s32.totalorder %s22, %s23
    %p34 = scmp.eq.s32.totalorder %s14, 0
    %p35 = por %p33, %p34
    %p36 = scmp.ne.s32.totalorder %s22, %s23
    %p37 = scmp.eq.s32.totalorder %s15, 1
    %p38 = por %p36, %p37
    %p40 = scmp.ne.s32.totalorder %s23, %s39
    %p41 = scmp.eq.s32.totalorder %s15, 0
    %p42 = por %p40, %p41
    %s44 = sadd.s32 %s43, 1
    %p47 = scmp.eq.s32.totalorder %s9, 1
    %p48 = scmp.ne.s32.totalorder %s43, %s45
    %p49 = scmp.eq.s32.totalorder %s9, 0
    %p50 = por %p48, %p49
    %p51 = scmp.ne.s32.totalorder %s43, %s45
    %p52 = scmp.eq.s32.totalorder %s14, 1
    %p53 = por %p51, %p52
    %p54 = scmp.ne.s32.totalorder %s45, %s46
    %p55 = scmp.eq.s32.totalorder %s14, 0
    %p56 = por %p54, %p55
    %p57 = scmp.ne.s32.totalorder %s45, %s46
    %p58 = scmp.eq.s32.totalorder %s15, 1
    %p59 = por %p57, %p58
    %p61 = scmp.ne.s32.totalorder %s46, %s60
    %p62 = scmp.eq.s32.totalorder %s15, 0
    %p63 = por %p61, %p62
    %s65 = sadd.s32 %s64, 1
    %p68 = scmp.eq.s32.totalorder %s9, 1
    %p69 = scmp.ne.s32.totalorder %s64, %s66
    %p70 = scmp.eq.s32.totalorder %s9, 0
    %p71 = por %p69, %p70
    %p72 = scmp.ne.s32.totalorder %s64, %s66
    %p73 = scmp.eq.s32.totalorder %s14, 1
    %p74 = por %p72, %p73
    %p75 = scmp.ne.s32.totalorder %s66, %s67
    %p76 = scmp.eq.s32.totalorder %s14, 0
    %p77 = por %p75, %p76
    %p78 = scmp.ne.s32.totalorder %s66, %s67
    %p79 = scmp.eq.s32.totalorder %s15, 1
    %p80 = por %p78, %p79
    %p82 = scmp.ne.s32.totalorder %s67, %s81
    %p83 = scmp.eq.s32.totalorder %s15, 0
    %p84 = por %p82, %p83
    %s85 = ssub.s32 %s9, %s16
    %p86 = scmp.eq.s32.totalorder %s85, 0
    %s88 = sadd.s32 %s87, 1
    %s89 = scalar_select %p86, %s87, %s88
    %p92 = pneg %p86
    %p93 = scmp.eq.s32.totalorder %s9, 1
    %p94 = por %p92, %p93
    %p95 = scmp.ne.s32.totalorder %s87, %s90
    %p96 = scmp.eq.s32.totalorder %s9, 0
    %p97 = por %p95, %p96
    %p98 = scmp.ne.s32.totalorder %s87, %s90
    %p99 = scmp.eq.s32.totalorder %s14, 1
    %p100 = por %p98, %p99
    %p101 = scmp.ne.s32.totalorder %s90, %s91
    %p102 = scmp.eq.s32.totalorder %s14, 0
    %p103 = por %p101, %p102
    %p104 = scmp.ne.s32.totalorder %s90, %s91
    %p105 = scmp.eq.s32.totalorder %s15, 1
    %p106 = por %p104, %p105
    %p108 = scmp.ne.s32.totalorder %s91, %s107
    %p109 = scmp.eq.s32.totalorder %s15, 0
    %p110 = por %p108, %p109
    %p111 = scmp.le.s32.totalorder 1, %s9
    %p112 = scmp.lt.s32.totalorder %s9, 3
    %p113 = pnand %p111, %p112
    %p114 = pneg %p113
    // Predicated region
    $region9: #{dqn_forward.3} parent=5 // pred_check
      _
    $region10: #{dqn_forward.3} parent=5 // pred_check_branch
      %116 = sbr.rel (%p113) target = $region12
    $region11: #{dqn_forward.3} parent=5 // pred_region
      %s117 = ssub.s32 %s9, 1
      // Predicated region
      $region13: #{dqn_forward.3} parent=11 // pred_check
        %p118 = pneg %p56
      $region14: #{dqn_forward.3} parent=11 // pred_check_branch
        %120 = sbr.rel (%p118) target = $region16
      $region15: #{dqn_forward.3} parent=11 // pred_region
        _
      $region16: #{dqn_forward.3} parent=11 // pred_fallthru
        _
      // Predicated region
      $region17: #{dqn_forward.3} parent=11 // pred_check
        %p121 = pneg %p77
      $region18: #{dqn_forward.3} parent=11 // pred_check_branch
        %123 = sbr.rel (%p121) target = $region20
      $region19: #{dqn_forward.3} parent=11 // pred_region
        _
      $region20: #{dqn_forward.3} parent=11 // pred_fallthru
        _
    $region12: #{dqn_forward.3} parent=5 // pred_fallthru
      _
    %p124 = scmp.lt.s32.totalorder %s9, 2
    // Predicated region
    $region21: #{dqn_forward.3} parent=5 // pred_check
      %p125 = pneg %p124
    $region22: #{dqn_forward.3} parent=5 // pred_check_branch
      %127 = sbr.rel (%p125) target = $region24
    $region23: #{dqn_forward.3} parent=5 // pred_region
      // Predicated region
      $region25: #{dqn_forward.3} parent=23 // pred_check
        %p128 = pneg %p29
      $region26: #{dqn_forward.3} parent=23 // pred_check_branch
        %130 = sbr.rel (%p128) target = $region28
      $region27: #{dqn_forward.3} parent=23 // pred_region
        %s131 = smul.u32 8, %s9
        %p132 = scmp.lt.s32.totalorder %s131, 15
        %s133 = scalar_select %p132, %s131, 15
        %s134 = smul.addr %s133, 2
        %s135 = smul.addr %s134, 4
        %s136 = scalar_lea.vmem %s0, %s135
        %s137 = smul.u32 8, %s9
      $region28: #{dqn_forward.3} parent=23 // pred_fallthru
        _
    $region24: #{dqn_forward.3} parent=5 // pred_fallthru
      _
    %p138 = scmp.le.s32.totalorder 1, %s9
    %p139 = scmp.lt.s32.totalorder %s9, 3
    %p140 = pnand %p138, %p139
    %p141 = pneg %p140
    // Predicated region
    $region29: #{dqn_forward.3} parent=5 // pred_check
      _
    $region30: #{dqn_forward.3} parent=5 // pred_check_branch
      %143 = sbr.rel (%p140) target = $region32
    $region31: #{dqn_forward.3} parent=5 // pred_region
      %s144 = ssub.s32 %s9, 1
      %s145 = smul.u32 8, %s14
      %p146 = scmp.lt.s32.totalorder %s145, 15
      %s147 = scalar_select %p146, %s145, 15
      %s148 = smul.addr %s147, 2
      %s149 = smul.addr %s148, 4
      %s150 = scalar_lea.vmem %s0, %s149
      %p151 = pneg %p35
      %p152 = pneg %p32
      %p153 = pneg %p56
      %p154 = pneg %p53
      %p155 = pneg %p77
      %p156 = pneg %p74
      %p157 = pneg %p103
      %p158 = pneg %p100
      %s159 = smul.u32 8, %s14
      %p160 = scmp.lt.s32.totalorder %s159, 15
      %s161 = scalar_select %p160, %s159, 15
      %s162 = smul.addr %s161, 4
      %s163 = scalar_lea.vmem %s3, %s162
      %s164 = smul.u32 8, %s14
      %p165 = scmp.lt.s32.totalorder %s164, 15
      %s166 = scalar_select %p165, %s164, 15
      %s167 = smul.addr %s166, 2
      %s168 = smul.addr %s167, 4
      %s169 = scalar_lea.vmem %s0, %s168
      %s170 = smul.u32 8, %s14
      %s171 = smul.u32 8, %s14
      %p172 = scmp.lt.s32.totalorder %s171, 15
      %s173 = scalar_select %p172, %s171, 15
      %s174 = smul.addr %s173, 4
      %s175 = scalar_lea.vmem %s3, %s174
      %s176 = smul.u32 8, %s14
      %v178 = vld [vmem:[%s169] sm:$0xff]
      %v179 = vld [vmem:[%s169 + $0x8] sm:$0xff]
      %v180 = vld [vmem:[%s169 + $0x10] sm:$0xff]
      %v181 = vld [vmem:[%s169 + $0x18] sm:$0xff]
      %v182 = vld [vmem:[%s169 + $0x20] sm:$0xff]
      %v183 = vld [vmem:[%s169 + $0x28] sm:$0xff]
      %v184 = vld [vmem:[%s169 + $0x30] sm:$0xff]
      %v185 = vld [vmem:[%s169 + $0x38] sm:$0xff]
      %v186 = vld [vmem:[%s1] sm:$0xf]
      %v187 = vld [vmem:[%s1 + $0x4] sm:$0xf]
      %v188 = vld [vmem:[%s1 + $0x8] sm:$0xf]
      %v189 = vld [vmem:[%s1 + $0xc] sm:$0xf]
      %v190 = vld [vmem:[%s1 + $0x10] sm:$0xf]
      %v191 = vld [vmem:[%s1 + $0x14] sm:$0xf]
      %v192 = vld [vmem:[%s1 + $0x18] sm:$0xf]
      %v193 = vld [vmem:[%s1 + $0x1c] sm:$0xf]
      %v194 = vld [vmem:[%s1 + $0x20] sm:$0xf]
      %v195 = vld [vmem:[%s1 + $0x24] sm:$0xf]
      %v196 = vld [vmem:[%s1 + $0x28] sm:$0xf]
      %v197 = vld [vmem:[%s1 + $0x2c] sm:$0xf]
      %v198 = vld [vmem:[%s1 + $0x30] sm:$0xf]
      %v199 = vld [vmem:[%s1 + $0x34] sm:$0xf]
      %v200 = vld [vmem:[%s1 + $0x38] sm:$0xf]
      %v201 = vld [vmem:[%s1 + $0x3c] sm:$0xf]
      %v202 = vld [vmem:[%s1 + $0x40] sm:$0xf]
      %v203 = vld [vmem:[%s1 + $0x44] sm:$0xf]
      %v204 = vld [vmem:[%s1 + $0x48] sm:$0xf]
      %v205 = vld [vmem:[%s1 + $0x4c] sm:$0xf]
      %v206 = vld [vmem:[%s1 + $0x50] sm:$0xf]
      %v207 = vld [vmem:[%s1 + $0x54] sm:$0xf]
      %v208 = vld [vmem:[%s1 + $0x58] sm:$0xf]
      %v209 = vld [vmem:[%s1 + $0x5c] sm:$0xf]
      %v210 = vld [vmem:[%s1 + $0x60] sm:$0xf]
      %v211 = vld [vmem:[%s1 + $0x64] sm:$0xf]
      %v212 = vld [vmem:[%s1 + $0x68] sm:$0xf]
      %v213 = vld [vmem:[%s1 + $0x6c] sm:$0xf]
      %v214 = vld [vmem:[%s1 + $0x70] sm:$0xf]
      %v215 = vld [vmem:[%s1 + $0x74] sm:$0xf]
      %v216 = vld [vmem:[%s1 + $0x78] sm:$0xf]
      %v217 = vld [vmem:[%s1 + $0x7c] sm:$0xf]
      %v218 = vld [vmem:[%s2] sm:$0x1]
      %v220 = vlaneseq
      %v221 = vshrl.u32 %v220, 7
      %v222 = vsub.s32 0, %v221
      %v223 = vrot.slane %v218, %v222
      %v233 = vunpack.c.l.b16 %v178
      %v234 = vunpack.c.h.b16 %v178
      %v235 = vunpack.c.l.b16 %v179
      %v236 = vunpack.c.h.b16 %v179
      %v237 = vunpack.c.l.b16 %v180
      %v238 = vunpack.c.h.b16 %v180
      %v239 = vunpack.c.l.b16 %v181
      %v240 = vunpack.c.h.b16 %v181
      %v241 = vunpack.c.l.b16 %v182
      %v242 = vunpack.c.h.b16 %v182
      %v243 = vunpack.c.l.b16 %v183
      %v244 = vunpack.c.h.b16 %v183
      %v245 = vunpack.c.l.b16 %v184
      %v246 = vunpack.c.h.b16 %v184
      %v247 = vunpack.c.l.b16 %v185
      %v248 = vunpack.c.h.b16 %v185
      %v249 = vpack.c.b16 %v235, %v233
      %v250 = vpack.c.b16 %v236, %v234
      %v251 = vpack.c.b16 %v239, %v237
      %v252 = vpack.c.b16 %v240, %v238
      %v253 = vpack.c.b16 %v243, %v241
      %v254 = vpack.c.b16 %v244, %v242
      %v255 = vpack.c.b16 %v247, %v245
      %v256 = vpack.c.b16 %v248, %v246
      %v297 = vunpack.c.l.b16 %v186
      %v298 = vunpack.c.l.b16 %v187
      %v299 = vunpack.c.l.b16 %v188
      %v300 = vunpack.c.l.b16 %v189
      %v301 = vunpack.c.l.b16 %v190
      %v302 = vunpack.c.l.b16 %v191
      %v303 = vunpack.c.l.b16 %v192
      %v304 = vunpack.c.l.b16 %v193
      %v305 = vunpack.c.l.b16 %v194
      %v306 = vunpack.c.l.b16 %v195
      %v307 = vunpack.c.l.b16 %v196
      %v308 = vunpack.c.l.b16 %v197
      %v309 = vunpack.c.l.b16 %v198
      %v310 = vunpack.c.l.b16 %v199
      %v311 = vunpack.c.l.b16 %v200
      %v312 = vunpack.c.l.b16 %v201
      %v313 = vunpack.c.l.b16 %v202
      %v314 = vunpack.c.l.b16 %v203
      %v315 = vunpack.c.l.b16 %v204
      %v316 = vunpack.c.l.b16 %v205
      %v317 = vunpack.c.l.b16 %v206
      %v318 = vunpack.c.l.b16 %v207
      %v319 = vunpack.c.l.b16 %v208
      %v320 = vunpack.c.l.b16 %v209
      %v321 = vunpack.c.l.b16 %v210
      %v322 = vunpack.c.l.b16 %v211
      %v323 = vunpack.c.l.b16 %v212
      %v324 = vunpack.c.l.b16 %v213
      %v325 = vunpack.c.l.b16 %v214
      %v326 = vunpack.c.l.b16 %v215
      %v327 = vunpack.c.l.b16 %v216
      %v328 = vunpack.c.l.b16 %v217
      %v329 = vpack.c.b16 %v298, %v297
      %v330 = vpack.c.b16 %v300, %v299
      %v331 = vpack.c.b16 %v302, %v301
      %v332 = vpack.c.b16 %v304, %v303
      %v333 = vpack.c.b16 %v306, %v305
      %v334 = vpack.c.b16 %v308, %v307
      %v335 = vpack.c.b16 %v310, %v309
      %v336 = vpack.c.b16 %v312, %v311
      %v337 = vpack.c.b16 %v314, %v313
      %v338 = vpack.c.b16 %v316, %v315
      %v339 = vpack.c.b16 %v318, %v317
      %v340 = vpack.c.b16 %v320, %v319
      %v341 = vpack.c.b16 %v322, %v321
      %v342 = vpack.c.b16 %v324, %v323
      %v343 = vpack.c.b16 %v326, %v325
      %v344 = vpack.c.b16 %v328, %v327
      %361 = vmatprep.subr.bf16.mxu0 0
      %362 = vmatpush1.bf16.msra.mxu0 %v329
      %363 = vmatprep.subr.bf16.mxu0 0
      %364 = vmatpush1.bf16.msra.mxu0 %v330
      %365 = vmatprep.subr.bf16.mxu0 0
      %366 = vmatpush1.bf16.msra.mxu0 %v331
      %367 = vmatprep.subr.bf16.mxu0 0
      %368 = vmatpush1.bf16.msra.mxu0 %v332
      %369 = vmatprep.subr.bf16.mxu0 0
      %370 = vmatpush1.bf16.msra.mxu0 %v333
      %371 = vmatprep.subr.bf16.mxu0 0
      %372 = vmatpush1.bf16.msra.mxu0 %v334
      %373 = vmatprep.subr.bf16.mxu0 0
      %374 = vmatpush1.bf16.msra.mxu0 %v335
      %375 = vmatprep.subr.bf16.mxu0 0
      %376 = vmatpush1.bf16.msra.mxu0 %v336
      %377 = vmatprep.subr.bf16.mxu0 0
      %378 = vmatpush1.bf16.msra.mxu0 %v337
      %379 = vmatprep.subr.bf16.mxu0 0
      %380 = vmatpush1.bf16.msra.mxu0 %v338
      %381 = vmatprep.subr.bf16.mxu0 0
      %382 = vmatpush1.bf16.msra.mxu0 %v339
      %383 = vmatprep.subr.bf16.mxu0 0
      %384 = vmatpush1.bf16.msra.mxu0 %v340
      %385 = vmatprep.subr.bf16.mxu0 0
      %386 = vmatpush1.bf16.msra.mxu0 %v341
      %387 = vmatprep.subr.bf16.mxu0 0
      %388 = vmatpush1.bf16.msra.mxu0 %v342
      %389 = vmatprep.subr.bf16.mxu0 0
      %390 = vmatpush1.bf16.msra.mxu0 %v343
      %391 = vmatprep.subr.bf16.mxu0 0
      %392 = vmatpush1.bf16.msra.mxu0 %v344
      %393 = vmatprep.mubr.bf16.mxu0 %v250
      %394 = vmatmul.mubr.bf16.gmra.mrb[0].mxu0 %v249
      %v395 = vpop.f32.mrb[0].mxu0
      %v396 = vadd.f32 %v223, %v395
      %v397 = vpop.f32.mrb[0].mxu0
      %v398 = vpop.f32.mrb[0].mxu0
      %v399 = vadd.f32 %v223, %v398
      %v400 = vpop.f32.mrb[0].mxu0
      %401 = vmatprep.mubr.bf16.mxu0 %v252
      %402 = vmatmul.mubr.bf16.gmra.mrb[0].mxu0 %v251
      %v403 = vpop.f32.mrb[0].mxu0
      %v404 = vadd.f32 %v223, %v403
      %v405 = vpop.f32.mrb[0].mxu0
      %v406 = vpop.f32.mrb[0].mxu0
      %v407 = vadd.f32 %v223, %v406
      %v408 = vpop.f32.mrb[0].mxu0
      %409 = vmatprep.mubr.bf16.mxu0 %v254
      %410 = vmatmul.mubr.bf16.gmra.mrb[0].mxu0 %v253
      %v411 = vpop.f32.mrb[0].mxu0
      %v412 = vadd.f32 %v223, %v411
      %v413 = vpop.f32.mrb[0].mxu0
      %v414 = vpop.f32.mrb[0].mxu0
      %v415 = vadd.f32 %v223, %v414
      %v416 = vpop.f32.mrb[0].mxu0
      %417 = vmatprep.mubr.bf16.mxu0 %v256
      %418 = vmatmul.mubr.bf16.gmra.mrb[0].mxu0 %v255
      %v419 = vpop.f32.mrb[0].mxu0
      %v420 = vadd.f32 %v223, %v419
      %v421 = vpop.f32.mrb[0].mxu0
      %v422 = vpop.f32.mrb[0].mxu0
      %v423 = vadd.f32 %v223, %v422
      %v424 = vpop.f32.mrb[0].mxu0
      %425 = vdwg.mxu0
      %v426 = vmax.f32 %v396, 0.0
      %v427 = vmax.f32 %v399, 0.0
      %v428 = vmax.f32 %v404, 0.0
      %v429 = vmax.f32 %v407, 0.0
      %v430 = vmax.f32 %v412, 0.0
      %v431 = vmax.f32 %v415, 0.0
      %v432 = vmax.f32 %v420, 0.0
      %v433 = vmax.f32 %v423, 0.0
      %v434 = vpack.c.bf16 %v427, %v426
      %v435 = vpack.c.bf16 %v429, %v428
      %v436 = vpack.c.bf16 %v431, %v430
      %v437 = vpack.c.bf16 %v433, %v432
      %v442 = vunpack.c.l.b16 %v434
      %v443 = vunpack.c.h.b16 %v434
      %v444 = vunpack.c.l.b16 %v435
      %v445 = vunpack.c.h.b16 %v435
      %v446 = vunpack.c.l.b16 %v436
      %v447 = vunpack.c.h.b16 %v436
      %v448 = vunpack.c.l.b16 %v437
      %v449 = vunpack.c.h.b16 %v437
      %v450 = vpack.c.b16 %v442, %v442
      %v451 = vpack.c.b16 %v443, %v443
      %v452 = vpack.c.b16 %v444, %v444
      %v453 = vpack.c.b16 %v445, %v445
      %v454 = vpack.c.b16 %v446, %v446
      %v455 = vpack.c.b16 %v447, %v447
      %v456 = vpack.c.b16 %v448, %v448
      %v457 = vpack.c.b16 %v449, %v449
      %466 = vst [vmem:[%s175] sm:$0xf] %v450
      %467 = vst [vmem:[%s175 + $0x4] sm:$0xf] %v451
      %468 = vst [vmem:[%s175 + $0x8] sm:$0xf] %v452
      %469 = vst [vmem:[%s175 + $0xc] sm:$0xf] %v453
      %470 = vst [vmem:[%s175 + $0x10] sm:$0xf] %v454
      %471 = vst [vmem:[%s175 + $0x14] sm:$0xf] %v455
      %472 = vst [vmem:[%s175 + $0x18] sm:$0xf] %v456
      %473 = vst [vmem:[%s175 + $0x1c] sm:$0xf] %v457
      %s474 = smul.u32 8, %s14
      %p475 = scmp.lt.s32.totalorder %s474, 15
      %s476 = scalar_select %p475, %s474, 15
      %s477 = smul.addr %s476, 4
      %s478 = scalar_lea.vmem %s3, %s477
      // Predicated region
      $region33: #{dqn_forward.3} parent=31 // pred_check
        %p479 = pneg %p100
      $region34: #{dqn_forward.3} parent=31 // pred_check_branch
        %481 = sbr.rel (%p479) target = $region36
      $region35: #{dqn_forward.3} parent=31 // pred_region
        %s482 = smul.u32 8, %s14
      $region36: #{dqn_forward.3} parent=31 // pred_fallthru
        _
    $region32: #{dqn_forward.3} parent=5 // pred_fallthru
      _
    %p483 = scmp.le.s32.totalorder 2, %s9
    // Predicated region
    $region37: #{dqn_forward.3} parent=5 // pred_check
      %p484 = pneg %p483
    $region38: #{dqn_forward.3} parent=5 // pred_check_branch
      %486 = sbr.rel (%p484) target = $region40
    $region39: #{dqn_forward.3} parent=5 // pred_region
      %s487 = ssub.s32 %s9, 2
      // Predicated region
      $region41: #{dqn_forward.3} parent=39 // pred_check
        %p488 = pneg %p106
      $region42: #{dqn_forward.3} parent=39 // pred_check_branch
        %490 = sbr.rel (%p488) target = $region44
      $region43: #{dqn_forward.3} parent=39 // pred_region
        %s491 = smul.u32 8, %s15
        %p492 = scmp.lt.s32.totalorder %s491, 15
        %s493 = scalar_select %p492, %s491, 15
        %s494 = smul.addr %s493, 4
        %s495 = scalar_lea.vmem %s3, %s494
      $region44: #{dqn_forward.3} parent=39 // pred_fallthru
        _
    $region40: #{dqn_forward.3} parent=5 // pred_fallthru
      _
  $region6: #{dqn_forward.3} parent=0 // loop_footer
    %s13 = sadd.s32 1, %s9
  $region7: #{dqn_forward.3} parent=0 // loop_footer_branch
    %8 = sbr.rel target = $region3
  $region8: #{dqn_forward.3} parent=0 // loop_exit
    _

// kernel: dqn_forward.4
$region0: #{dqn_forward.4}
  #allocation0 [shape = 'u32[]', space=smem, size = 0x4, offset = 0x4, fixed_abs, tag = 'smem constant byte address 0x4 - core index']
  #allocation1 [shape = 'u32[144,128]{1,0:T(1,128)}', space=vmem, size = 0x12000, scoped, tag = 'internal scratch']
  %s0 = inlined_call_operand.vmem [shape: bf16[32,512], index: 0, kind: input, shape index: {}]
  %s1 = inlined_call_operand.vmem [shape: bf16[512,128], index: 1, kind: input, shape index: {}]
  %s2 = inlined_call_operand.vmem [shape: f32[1,128], index: 2, kind: input, shape index: {}]
  %s3 = inlined_call_operand.vmem [shape: bf16[32,128], index: 3, kind: output, shape index: {}]
  %s4 = sld [smem:[#allocation0]]
  $region45: #{dqn_forward.4} parent=0
    _
  %s6 = ssub.s32 1, %s4
  %s7 = scalar_select 0, %s6, %s4
  loop: start=0, step=1, limit=4
  $region2: #{dqn_forward.4} parent=0 // loop_pre_header
    _
  $region3: #{dqn_forward.4} parent=0 // loop_header
    %s9 = sphi 0, %s13
    %p10 = scmp.ge.s32.totalorder %s9, 4
    %s19 = sphi 0, %s21
    %s22 = sphi 0, %s19
    %s23 = sphi 0, %s22
    %s39 = sphi 0, %s23
    %s43 = sphi 0, %s43
    %s45 = sphi 0, %s43
    %s46 = sphi 0, %s45
    %s60 = sphi 0, %s46
    %s64 = sphi 0, %s64
    %s66 = sphi 0, %s64
    %s67 = sphi 0, %s66
    %s81 = sphi 0, %s67
    %s87 = sphi 0, %s89
    %s90 = sphi 0, %s87
    %s91 = sphi 0, %s90
    %s107 = sphi 0, %s91
  $region4: #{dqn_forward.4} parent=0 // loop_header_branch
    %12 = sbr.rel (%p10) target = $region8
  $region5: #{dqn_forward.4} parent=0 // loop_body
    %s14 = ssub.s32 %s9, 1
    %s15 = ssub.s32 %s9, 2
    %s16 = sadd.s32 %s9, 1
    %s17 = ssub.s32 %s9, %s16
    %p18 = scmp.eq.s32.totalorder %s17, 0
    %s20 = sadd.s32 %s19, 1
    %s21 = scalar_select %p18, %s19, %s20
    %p24 = pneg %p18
    %p25 = scmp.eq.s32.totalorder %s9, 1
    %p26 = por %p24, %p25
    %p27 = scmp.ne.s32.totalorder %s19, %s22
    %p28 = scmp.eq.s32.totalorder %s9, 0
    %p29 = por %p27, %p28
    %p30 = scmp.ne.s32.totalorder %s19, %s22
    %p31 = scmp.eq.s32.totalorder %s14, 1
    %p32 = por %p30, %p31
    %p33 = scmp.ne.s32.totalorder %s22, %s23
    %p34 = scmp.eq.s32.totalorder %s14, 0
    %p35 = por %p33, %p34
    %p36 = scmp.ne.s32.totalorder %s22, %s23
    %p37 = scmp.eq.s32.totalorder %s15, 1
    %p38 = por %p36, %p37
    %p40 = scmp.ne.s32.totalorder %s23, %s39
    %p41 = scmp.eq.s32.totalorder %s15, 0
    %p42 = por %p40, %p41
    %s44 = sadd.s32 %s43, 1
    %p47 = scmp.eq.s32.totalorder %s9, 1
    %p48 = scmp.ne.s32.totalorder %s43, %s45
    %p49 = scmp.eq.s32.totalorder %s9, 0
    %p50 = por %p48, %p49
    %p51 = scmp.ne.s32.totalorder %s43, %s45
    %p52 = scmp.eq.s32.totalorder %s14, 1
    %p53 = por %p51, %p52
    %p54 = scmp.ne.s32.totalorder %s45, %s46
    %p55 = scmp.eq.s32.totalorder %s14, 0
    %p56 = por %p54, %p55
    %p57 = scmp.ne.s32.totalorder %s45, %s46
    %p58 = scmp.eq.s32.totalorder %s15, 1
    %p59 = por %p57, %p58
    %p61 = scmp.ne.s32.totalorder %s46, %s60
    %p62 = scmp.eq.s32.totalorder %s15, 0
    %p63 = por %p61, %p62
    %s65 = sadd.s32 %s64, 1
    %p68 = scmp.eq.s32.totalorder %s9, 1
    %p69 = scmp.ne.s32.totalorder %s64, %s66
    %p70 = scmp.eq.s32.totalorder %s9, 0
    %p71 = por %p69, %p70
    %p72 = scmp.ne.s32.totalorder %s64, %s66
    %p73 = scmp.eq.s32.totalorder %s14, 1
    %p74 = por %p72, %p73
    %p75 = scmp.ne.s32.totalorder %s66, %s67
    %p76 = scmp.eq.s32.totalorder %s14, 0
    %p77 = por %p75, %p76
    %p78 = scmp.ne.s32.totalorder %s66, %s67
    %p79 = scmp.eq.s32.totalorder %s15, 1
    %p80 = por %p78, %p79
    %p82 = scmp.ne.s32.totalorder %s67, %s81
    %p83 = scmp.eq.s32.totalorder %s15, 0
    %p84 = por %p82, %p83
    %s85 = ssub.s32 %s9, %s16
    %p86 = scmp.eq.s32.totalorder %s85, 0
    %s88 = sadd.s32 %s87, 1
    %s89 = scalar_select %p86, %s87, %s88
    %p92 = pneg %p86
    %p93 = scmp.eq.s32.totalorder %s9, 1
    %p94 = por %p92, %p93
    %p95 = scmp.ne.s32.totalorder %s87, %s90
    %p96 = scmp.eq.s32.totalorder %s9, 0
    %p97 = por %p95, %p96
    %p98 = scmp.ne.s32.totalorder %s87, %s90
    %p99 = scmp.eq.s32.totalorder %s14, 1
    %p100 = por %p98, %p99
    %p101 = scmp.ne.s32.totalorder %s90, %s91
    %p102 = scmp.eq.s32.totalorder %s14, 0
    %p103 = por %p101, %p102
    %p104 = scmp.ne.s32.totalorder %s90, %s91
    %p105 = scmp.eq.s32.totalorder %s15, 1
    %p106 = por %p104, %p105
    %p108 = scmp.ne.s32.totalorder %s91, %s107
    %p109 = scmp.eq.s32.totalorder %s15, 0
    %p110 = por %p108, %p109
    %p111 = scmp.le.s32.totalorder 1, %s9
    %p112 = scmp.lt.s32.totalorder %s9, 3
    %p113 = pnand %p111, %p112
    %p114 = pneg %p113
    // Predicated region
    $region9: #{dqn_forward.4} parent=5 // pred_check
      _
    $region10: #{dqn_forward.4} parent=5 // pred_check_branch
      %116 = sbr.rel (%p113) target = $region12
    $region11: #{dqn_forward.4} parent=5 // pred_region
      %s117 = ssub.s32 %s9, 1
      // Predicated region
      $region13: #{dqn_forward.4} parent=11 // pred_check
        %p118 = pneg %p56
      $region14: #{dqn_forward.4} parent=11 // pred_check_branch
        %120 = sbr.rel (%p118) target = $region16
      $region15: #{dqn_forward.4} parent=11 // pred_region
        _
      $region16: #{dqn_forward.4} parent=11 // pred_fallthru
        _
      // Predicated region
      $region17: #{dqn_forward.4} parent=11 // pred_check
        %p121 = pneg %p77
      $region18: #{dqn_forward.4} parent=11 // pred_check_branch
        %123 = sbr.rel (%p121) target = $region20
      $region19: #{dqn_forward.4} parent=11 // pred_region
        _
      $region20: #{dqn_forward.4} parent=11 // pred_fallthru
        _
    $region12: #{dqn_forward.4} parent=5 // pred_fallthru
      _
    %p124 = scmp.lt.s32.totalorder %s9, 2
    // Predicated region
    $region21: #{dqn_forward.4} parent=5 // pred_check
      %p125 = pneg %p124
    $region22: #{dqn_forward.4} parent=5 // pred_check_branch
      %127 = sbr.rel (%p125) target = $region24
    $region23: #{dqn_forward.4} parent=5 // pred_region
      // Predicated region
      $region25: #{dqn_forward.4} parent=23 // pred_check
        %p128 = pneg %p29
      $region26: #{dqn_forward.4} parent=23 // pred_check_branch
        %130 = sbr.rel (%p128) target = $region28
      $region27: #{dqn_forward.4} parent=23 // pred_region
        %s131 = smul.u32 2, %s9
        %p132 = scmp.lt.s32.totalorder %s131, 3
        %s133 = scalar_select %p132, %s131, 3
        %s134 = smul.addr %s133, 4
        %s135 = smul.addr %s134, 4
        %s136 = scalar_lea.vmem %s0, %s135
        %s137 = smul.u32 2, %s9
      $region28: #{dqn_forward.4} parent=23 // pred_fallthru
        _
    $region24: #{dqn_forward.4} parent=5 // pred_fallthru
      _
    %p138 = scmp.le.s32.totalorder 1, %s9
    %p139 = scmp.lt.s32.totalorder %s9, 3
    %p140 = pnand %p138, %p139
    %p141 = pneg %p140
    // Predicated region
    $region29: #{dqn_forward.4} parent=5 // pred_check
      _
    $region30: #{dqn_forward.4} parent=5 // pred_check_branch
      %143 = sbr.rel (%p140) target = $region32
    $region31: #{dqn_forward.4} parent=5 // pred_region
      %s144 = ssub.s32 %s9, 1
      %s145 = smul.u32 2, %s14
      %p146 = scmp.lt.s32.totalorder %s145, 3
      %s147 = scalar_select %p146, %s145, 3
      %s148 = smul.addr %s147, 4
      %s149 = smul.addr %s148, 4
      %s150 = scalar_lea.vmem %s0, %s149
      %p151 = pneg %p35
      %p152 = pneg %p32
      %p153 = pneg %p56
      %p154 = pneg %p53
      %p155 = pneg %p77
      %p156 = pneg %p74
      %p157 = pneg %p103
      %p158 = pneg %p100
      %s159 = smul.u32 2, %s14
      %p160 = scmp.lt.s32.totalorder %s159, 3
      %s161 = scalar_select %p160, %s159, 3
      %s162 = smul.addr %s161, 4
      %s163 = scalar_lea.vmem %s3, %s162
      %s164 = smul.u32 2, %s14
      %p165 = scmp.lt.s32.totalorder %s164, 3
      %s166 = scalar_select %p165, %s164, 3
      %s167 = smul.addr %s166, 4
      %s168 = smul.addr %s167, 4
      %s169 = scalar_lea.vmem %s0, %s168
      %s170 = smul.u32 2, %s14
      %s171 = smul.u32 2, %s14
      %p172 = scmp.lt.s32.totalorder %s171, 3
      %s173 = scalar_select %p172, %s171, 3
      %s174 = smul.addr %s173, 4
      %s175 = scalar_lea.vmem %s3, %s174
      %s176 = smul.u32 2, %s14
      %v178 = vld [vmem:[%s169] sm:$0xff]
      %v179 = vld [vmem:[%s169 + $0x8] sm:$0xff]
      %v180 = vld [vmem:[%s169 + $0x10] sm:$0xff]
      %v181 = vld [vmem:[%s169 + $0x18] sm:$0xff]
      %v182 = vld [vmem:[%s1] sm:$0xf]
      %v183 = vld [vmem:[%s1 + $0x4] sm:$0xf]
      %v184 = vld [vmem:[%s1 + $0x8] sm:$0xf]
      %v185 = vld [vmem:[%s1 + $0xc] sm:$0xf]
      %v186 = vld [vmem:[%s1 + $0x10] sm:$0xf]
      %v187 = vld [vmem:[%s1 + $0x14] sm:$0xf]
      %v188 = vld [vmem:[%s1 + $0x18] sm:$0xf]
      %v189 = vld [vmem:[%s1 + $0x1c] sm:$0xf]
      %v190 = vld [vmem:[%s1 + $0x20] sm:$0xf]
      %v191 = vld [vmem:[%s1 + $0x24] sm:$0xf]
      %v192 = vld [vmem:[%s1 + $0x28] sm:$0xf]
      %v193 = vld [vmem:[%s1 + $0x2c] sm:$0xf]
      %v194 = vld [vmem:[%s1 + $0x30] sm:$0xf]
      %v195 = vld [vmem:[%s1 + $0x34] sm:$0xf]
      %v196 = vld [vmem:[%s1 + $0x38] sm:$0xf]
      %v197 = vld [vmem:[%s1 + $0x3c] sm:$0xf]
      %v198 = vld [vmem:[%s1 + $0x40] sm:$0xf]
      %v199 = vld [vmem:[%s1 + $0x44] sm:$0xf]
      %v200 = vld [vmem:[%s1 + $0x48] sm:$0xf]
      %v201 = vld [vmem:[%s1 + $0x4c] sm:$0xf]
      %v202 = vld [vmem:[%s1 + $0x50] sm:$0xf]
      %v203 = vld [vmem:[%s1 + $0x54] sm:$0xf]
      %v204 = vld [vmem:[%s1 + $0x58] sm:$0xf]
      %v205 = vld [vmem:[%s1 + $0x5c] sm:$0xf]
      %v206 = vld [vmem:[%s1 + $0x60] sm:$0xf]
      %v207 = vld [vmem:[%s1 + $0x64] sm:$0xf]
      %v208 = vld [vmem:[%s1 + $0x68] sm:$0xf]
      %v209 = vld [vmem:[%s1 + $0x6c] sm:$0xf]
      %v210 = vld [vmem:[%s1 + $0x70] sm:$0xf]
      %v211 = vld [vmem:[%s1 + $0x74] sm:$0xf]
      %v212 = vld [vmem:[%s1 + $0x78] sm:$0xf]
      %v213 = vld [vmem:[%s1 + $0x7c] sm:$0xf]
      %v214 = vld [vmem:[%s1 + $0x80] sm:$0xf]
      %v215 = vld [vmem:[%s1 + $0x84] sm:$0xf]
      %v216 = vld [vmem:[%s1 + $0x88] sm:$0xf]
      %v217 = vld [vmem:[%s1 + $0x8c] sm:$0xf]
      %v218 = vld [vmem:[%s1 + $0x90] sm:$0xf]
      %v219 = vld [vmem:[%s1 + $0x94] sm:$0xf]
      %v220 = vld [vmem:[%s1 + $0x98] sm:$0xf]
      %v221 = vld [vmem:[%s1 + $0x9c] sm:$0xf]
      %v222 = vld [vmem:[%s1 + $0xa0] sm:$0xf]
      %v223 = vld [vmem:[%s1 + $0xa4] sm:$0xf]
      %v224 = vld [vmem:[%s1 + $0xa8] sm:$0xf]
      %v225 = vld [vmem:[%s1 + $0xac] sm:$0xf]
      %v226 = vld [vmem:[%s1 + $0xb0] sm:$0xf]
      %v227 = vld [vmem:[%s1 + $0xb4] sm:$0xf]
      %v228 = vld [vmem:[%s1 + $0xb8] sm:$0xf]
      %v229 = vld [vmem:[%s1 + $0xbc] sm:$0xf]
      %v230 = vld [vmem:[%s1 + $0xc0] sm:$0xf]
      %v231 = vld [vmem:[%s1 + $0xc4] sm:$0xf]
      %v232 = vld [vmem:[%s1 + $0xc8] sm:$0xf]
      %v233 = vld [vmem:[%s1 + $0xcc] sm:$0xf]
      %v234 = vld [vmem:[%s1 + $0xd0] sm:$0xf]
      %v235 = vld [vmem:[%s1 + $0xd4] sm:$0xf]
      %v236 = vld [vmem:[%s1 + $0xd8] sm:$0xf]
      %v237 = vld [vmem:[%s1 + $0xdc] sm:$0xf]
      %v238 = vld [vmem:[%s1 + $0xe0] sm:$0xf]
      %v239 = vld [vmem:[%s1 + $0xe4] sm:$0xf]
      %v240 = vld [vmem:[%s1 + $0xe8] sm:$0xf]
      %v241 = vld [vmem:[%s1 + $0xec] sm:$0xf]
      %v242 = vld [vmem:[%s1 + $0xf0] sm:$0xf]
      %v243 = vld [vmem:[%s1 + $0xf4] sm:$0xf]
      %v244 = vld [vmem:[%s1 + $0xf8] sm:$0xf]
      %v245 = vld [vmem:[%s1 + $0xfc] sm:$0xf]
      %v246 = vld [vmem:[%s2] sm:$0x1]
      %v248 = vlaneseq
      %v249 = vshrl.u32 %v248, 7
      %v250 = vsub.s32 0, %v249
      %v251 = vrot.slane %v246, %v250
      %v257 = vunpack.c.l.b16 %v178
      %v258 = vunpack.c.h.b16 %v178
      %v259 = vunpack.c.l.b16 %v179
      %v260 = vunpack.c.h.b16 %v179
      %v261 = vunpack.c.l.b16 %v180
      %v262 = vunpack.c.h.b16 %v180
      %v263 = vunpack.c.l.b16 %v181
      %v264 = vunpack.c.h.b16 %v181
      %v265 = vpack.c.b16 %v261, %v257
      %v266 = vpack.c.b16 %v262, %v258
      %v267 = vpack.c.b16 %v263, %v259
      %v268 = vpack.c.b16 %v264, %v260
      %v337 = vunpack.c.l.b16 %v182
      %v338 = vunpack.c.l.b16 %v183
      %v339 = vunpack.c.l.b16 %v184
      %v340 = vunpack.c.l.b16 %v185
      %v341 = vunpack.c.l.b16 %v186
      %v342 = vunpack.c.l.b16 %v187
      %v343 = vunpack.c.l.b16 %v188
      %v344 = vunpack.c.l.b16 %v189
      %v345 = vunpack.c.l.b16 %v190
      %v346 = vunpack.c.l.b16 %v191
      %v347 = vunpack.c.l.b16 %v192
      %v348 = vunpack.c.l.b16 %v193
      %v349 = vunpack.c.l.b16 %v194
      %v350 = vunpack.c.l.b16 %v195
      %v351 = vunpack.c.l.b16 %v196
      %v352 = vunpack.c.l.b16 %v197
      %v353 = vunpack.c.l.b16 %v198
      %v354 = vunpack.c.l.b16 %v199
      %v355 = vunpack.c.l.b16 %v200
      %v356 = vunpack.c.l.b16 %v201
      %v357 = vunpack.c.l.b16 %v202
      %v358 = vunpack.c.l.b16 %v203
      %v359 = vunpack.c.l.b16 %v204
      %v360 = vunpack.c.l.b16 %v205
      %v361 = vunpack.c.l.b16 %v206
      %v362 = vunpack.c.l.b16 %v207
      %v363 = vunpack.c.l.b16 %v208
      %v364 = vunpack.c.l.b16 %v209
      %v365 = vunpack.c.l.b16 %v210
      %v366 = vunpack.c.l.b16 %v211
      %v367 = vunpack.c.l.b16 %v212
      %v368 = vunpack.c.l.b16 %v213
      %v369 = vunpack.c.l.b16 %v214
      %v370 = vunpack.c.l.b16 %v215
      %v371 = vunpack.c.l.b16 %v216
      %v372 = vunpack.c.l.b16 %v217
      %v373 = vunpack.c.l.b16 %v218
      %v374 = vunpack.c.l.b16 %v219
      %v375 = vunpack.c.l.b16 %v220
      %v376 = vunpack.c.l.b16 %v221
      %v377 = vunpack.c.l.b16 %v222
      %v378 = vunpack.c.l.b16 %v223
      %v379 = vunpack.c.l.b16 %v224
      %v380 = vunpack.c.l.b16 %v225
      %v381 = vunpack.c.l.b16 %v226
      %v382 = vunpack.c.l.b16 %v227
      %v383 = vunpack.c.l.b16 %v228
      %v384 = vunpack.c.l.b16 %v229
      %v385 = vunpack.c.l.b16 %v230
      %v386 = vunpack.c.l.b16 %v231
      %v387 = vunpack.c.l.b16 %v232
      %v388 = vunpack.c.l.b16 %v233
      %v389 = vunpack.c.l.b16 %v234
      %v390 = vunpack.c.l.b16 %v235
      %v391 = vunpack.c.l.b16 %v236
      %v392 = vunpack.c.l.b16 %v237
      %v393 = vunpack.c.l.b16 %v238
      %v394 = vunpack.c.l.b16 %v239
      %v395 = vunpack.c.l.b16 %v240
      %v396 = vunpack.c.l.b16 %v241
      %v397 = vunpack.c.l.b16 %v242
      %v398 = vunpack.c.l.b16 %v243
      %v399 = vunpack.c.l.b16 %v244
      %v400 = vunpack.c.l.b16 %v245
      %v401 = vpack.c.b16 %v338, %v337
      %v402 = vpack.c.b16 %v340, %v339
      %v403 = vpack.c.b16 %v342, %v341
      %v404 = vpack.c.b16 %v344, %v343
      %v405 = vpack.c.b16 %v346, %v345
      %v406 = vpack.c.b16 %v348, %v347
      %v407 = vpack.c.b16 %v350, %v349
      %v408 = vpack.c.b16 %v352, %v351
      %v409 = vpack.c.b16 %v354, %v353
      %v410 = vpack.c.b16 %v356, %v355
      %v411 = vpack.c.b16 %v358, %v357
      %v412 = vpack.c.b16 %v360, %v359
      %v413 = vpack.c.b16 %v362, %v361
      %v414 = vpack.c.b16 %v364, %v363
      %v415 = vpack.c.b16 %v366, %v365
      %v416 = vpack.c.b16 %v368, %v367
      %v417 = vpack.c.b16 %v370, %v369
      %v418 = vpack.c.b16 %v372, %v371
      %v419 = vpack.c.b16 %v374, %v373
      %v420 = vpack.c.b16 %v376, %v375
      %v421 = vpack.c.b16 %v378, %v377
      %v422 = vpack.c.b16 %v380, %v379
      %v423 = vpack.c.b16 %v382, %v381
      %v424 = vpack.c.b16 %v384, %v383
      %v425 = vpack.c.b16 %v386, %v385
      %v426 = vpack.c.b16 %v388, %v387
      %v427 = vpack.c.b16 %v390, %v389
      %v428 = vpack.c.b16 %v392, %v391
      %v429 = vpack.c.b16 %v394, %v393
      %v430 = vpack.c.b16 %v396, %v395
      %v431 = vpack.c.b16 %v398, %v397
      %v432 = vpack.c.b16 %v400, %v399
      %465 = vmatprep.subr.bf16.mxu0 0
      %466 = vmatpush1.bf16.msra.mxu0 %v401
      %467 = vmatprep.subr.bf16.mxu0 0
      %468 = vmatpush1.bf16.msra.mxu0 %v402
      %469 = vmatprep.subr.bf16.mxu0 0
      %470 = vmatpush1.bf16.msra.mxu0 %v403
      %471 = vmatprep.subr.bf16.mxu0 0
      %472 = vmatpush1.bf16.msra.mxu0 %v404
      %473 = vmatprep.subr.bf16.mxu0 0
      %474 = vmatpush1.bf16.msra.mxu0 %v405
      %475 = vmatprep.subr.bf16.mxu0 0
      %476 = vmatpush1.bf16.msra.mxu0 %v406
      %477 = vmatprep.subr.bf16.mxu0 0
      %478 = vmatpush1.bf16.msra.mxu0 %v407
      %479 = vmatprep.subr.bf16.mxu0 0
      %480 = vmatpush1.bf16.msra.mxu0 %v408
      %481 = vmatprep.subr.bf16.mxu0 0
      %482 = vmatpush1.bf16.msra.mxu0 %v409
      %483 = vmatprep.subr.bf16.mxu0 0
      %484 = vmatpush1.bf16.msra.mxu0 %v410
      %485 = vmatprep.subr.bf16.mxu0 0
      %486 = vmatpush1.bf16.msra.mxu0 %v411
      %487 = vmatprep.subr.bf16.mxu0 0
      %488 = vmatpush1.bf16.msra.mxu0 %v412
      %489 = vmatprep.subr.bf16.mxu0 0
      %490 = vmatpush1.bf16.msra.mxu0 %v413
      %491 = vmatprep.subr.bf16.mxu0 0
      %492 = vmatpush1.bf16.msra.mxu0 %v414
      %493 = vmatprep.subr.bf16.mxu0 0
      %494 = vmatpush1.bf16.msra.mxu0 %v415
      %495 = vmatprep.subr.bf16.mxu0 0
      %496 = vmatpush1.bf16.msra.mxu0 %v416
      %497 = vmatprep.mubr.bf16.mxu0 %v266
      %498 = vmatmul.mubr.bf16.gmra.mrb[0].mxu0 %v265
      %v499 = vpop.f32.mrb[0].mxu0
      %v500 = vadd.f32 %v251, %v499
      %v501 = vpop.f32.mrb[0].mxu0
      %v502 = vpop.f32.mrb[0].mxu0
      %v503 = vadd.f32 %v251, %v502
      %v504 = vpop.f32.mrb[0].mxu0
      %505 = vdwg.mxu0
      %506 = vmatprep.subr.bf16.mxu0 0
      %507 = vmatpush1.bf16.msra.mxu0 %v417
      %508 = vmatprep.subr.bf16.mxu0 0
      %509 = vmatpush1.bf16.msra.mxu0 %v418
      %510 = vmatprep.subr.bf16.mxu0 0
      %511 = vmatpush1.bf16.msra.mxu0 %v419
      %512 = vmatprep.subr.bf16.mxu0 0
      %513 = vmatpush1.bf16.msra.mxu0 %v420
      %514 = vmatprep.subr.bf16.mxu0 0
      %515 = vmatpush1.bf16.msra.mxu0 %v421
      %516 = vmatprep.subr.bf16.mxu0 0
      %517 = vmatpush1.bf16.msra.mxu0 %v422
      %518 = vmatprep.subr.bf16.mxu0 0
      %519 = vmatpush1.bf16.msra.mxu0 %v423
      %520 = vmatprep.subr.bf16.mxu0 0
      %521 = vmatpush1.bf16.msra.mxu0 %v424
      %522 = vmatprep.subr.bf16.mxu0 0
      %523 = vmatpush1.bf16.msra.mxu0 %v425
      %524 = vmatprep.subr.bf16.mxu0 0
      %525 = vmatpush1.bf16.msra.mxu0 %v426
      %526 = vmatprep.subr.bf16.mxu0 0
      %527 = vmatpush1.bf16.msra.mxu0 %v427
      %528 = vmatprep.subr.bf16.mxu0 0
      %529 = vmatpush1.bf16.msra.mxu0 %v428
      %530 = vmatprep.subr.bf16.mxu0 0
      %531 = vmatpush1.bf16.msra.mxu0 %v429
      %532 = vmatprep.subr.bf16.mxu0 0
      %533 = vmatpush1.bf16.msra.mxu0 %v430
      %534 = vmatprep.subr.bf16.mxu0 0
      %535 = vmatpush1.bf16.msra.mxu0 %v431
      %536 = vmatprep.subr.bf16.mxu0 0
      %537 = vmatpush1.bf16.msra.mxu0 %v432
      %538 = vmatprep.mubr.bf16.mxu0 %v268
      %539 = vmatmul.mubr.bf16.gmra.mrb[0].mxu0 %v267
      %v540 = vpop.f32.mrb[0].mxu0
      %v541 = vadd.f32 %v500, %v540
      %v542 = vpop.f32.mrb[0].mxu0
      %v543 = vpop.f32.mrb[0].mxu0
      %v544 = vadd.f32 %v503, %v543
      %v545 = vpop.f32.mrb[0].mxu0
      %546 = vdwg.mxu0
      %v547 = vmax.f32 %v541, 0.0
      %v548 = vmax.f32 %v544, 0.0
      %v549 = vpack.c.bf16 %v548, %v547
      %v551 = vunpack.c.l.b16 %v549
      %v552 = vunpack.c.h.b16 %v549
      %v553 = vpack.c.b16 %v551, %v551
      %v554 = vpack.c.b16 %v552, %v552
      %557 = vst [vmem:[%s175] sm:$0xf] %v553
      %558 = vst [vmem:[%s175 + $0x4] sm:$0xf] %v554
      %s559 = smul.u32 2, %s14
      %p560 = scmp.lt.s32.totalorder %s559, 3
      %s561 = scalar_select %p560, %s559, 3
      %s562 = smul.addr %s561, 4
      %s563 = scalar_lea.vmem %s3, %s562
      // Predicated region
      $region33: #{dqn_forward.4} parent=31 // pred_check
        %p564 = pneg %p100
      $region34: #{dqn_forward.4} parent=31 // pred_check_branch
        %566 = sbr.rel (%p564) target = $region36
      $region35: #{dqn_forward.4} parent=31 // pred_region
        %s567 = smul.u32 2, %s14
      $region36: #{dqn_forward.4} parent=31 // pred_fallthru
        _
    $region32: #{dqn_forward.4} parent=5 // pred_fallthru
      _
    %p568 = scmp.le.s32.totalorder 2, %s9
    // Predicated region
    $region37: #{dqn_forward.4} parent=5 // pred_check
      %p569 = pneg %p568
    $region38: #{dqn_forward.4} parent=5 // pred_check_branch
      %571 = sbr.rel (%p569) target = $region40
    $region39: #{dqn_forward.4} parent=5 // pred_region
      %s572 = ssub.s32 %s9, 2
      // Predicated region
      $region41: #{dqn_forward.4} parent=39 // pred_check
        %p573 = pneg %p106
      $region42: #{dqn_forward.4} parent=39 // pred_check_branch
        %575 = sbr.rel (%p573) target = $region44
      $region43: #{dqn_forward.4} parent=39 // pred_region
        %s576 = smul.u32 2, %s15
        %p577 = scmp.lt.s32.totalorder %s576, 3
        %s578 = scalar_select %p577, %s576, 3
        %s579 = smul.addr %s578, 4
        %s580 = scalar_lea.vmem %s3, %s579
      $region44: #{dqn_forward.4} parent=39 // pred_fallthru
        _
    $region40: #{dqn_forward.4} parent=5 // pred_fallthru
      _
  $region6: #{dqn_forward.4} parent=0 // loop_footer
    %s13 = sadd.s32 1, %s9
  $region7: #{dqn_forward.4} parent=0 // loop_footer_branch
    %8 = sbr.rel target = $region3
  $region8: #{dqn_forward.4} parent=0 // loop_exit
    _

// kernel: dqn_forward.5
$region0: #{dqn_forward.5}
  #allocation0 [shape = 'u32[]', space=smem, size = 0x4, offset = 0x4, fixed_abs, tag = 'smem constant byte address 0x4 - core index']
  #allocation1 [shape = 'u32[144,128]{1,0:T(1,128)}', space=vmem, size = 0x12000, scoped, tag = 'internal scratch']
  %s0 = inlined_call_operand.vmem [shape: bf16[8,640], index: 0, kind: input, shape index: {}]
  %s1 = inlined_call_operand.vmem [shape: bf16[640,128], index: 1, kind: input, shape index: {}]
  %s2 = inlined_call_operand.vmem [shape: f32[1,128], index: 2, kind: input, shape index: {}]
  %s3 = inlined_call_operand.vmem [shape: bf16[128,512], index: 3, kind: input, shape index: {}]
  %s4 = inlined_call_operand.vmem [shape: f32[1,512], index: 4, kind: input, shape index: {}]
  %s5 = inlined_call_operand.vmem [shape: bf16[512,128], index: 5, kind: input, shape index: {}]
  %s6 = inlined_call_operand.vmem [shape: f32[1,128], index: 6, kind: input, shape index: {}]
  %s7 = inlined_call_operand.vmem [shape: f32[8,128], index: 7, kind: output, shape index: {}]
  %s8 = sld [smem:[#allocation0]]
  $region38: #{dqn_forward.5} parent=0
    _
  %s10 = ssub.s32 1, %s8
  %s11 = scalar_select 0, %s10, %s8
  // Predicated region
  $region2: #{dqn_forward.5} parent=0 // pred_check
    _
  $region3: #{dqn_forward.5} parent=0 // pred_check_branch
    %13 = sbr.rel (0) target = $region5
  $region4: #{dqn_forward.5} parent=0 // pred_region
    _
  $region5: #{dqn_forward.5} parent=0 // pred_fallthru
    _
  // Predicated region
  $region6: #{dqn_forward.5} parent=0 // pred_check
    _
  $region7: #{dqn_forward.5} parent=0 // pred_check_branch
    %15 = sbr.rel (0) target = $region9
  $region8: #{dqn_forward.5} parent=0 // pred_region
    _
  $region9: #{dqn_forward.5} parent=0 // pred_fallthru
    _
  // Predicated region
  $region10: #{dqn_forward.5} parent=0 // pred_check
    _
  $region11: #{dqn_forward.5} parent=0 // pred_check_branch
    %17 = sbr.rel (0) target = $region13
  $region12: #{dqn_forward.5} parent=0 // pred_region
    _
  $region13: #{dqn_forward.5} parent=0 // pred_fallthru
    _
  // Predicated region
  $region14: #{dqn_forward.5} parent=0 // pred_check
    _
  $region15: #{dqn_forward.5} parent=0 // pred_check_branch
    %19 = sbr.rel (0) target = $region17
  $region16: #{dqn_forward.5} parent=0 // pred_region
    _
  $region17: #{dqn_forward.5} parent=0 // pred_fallthru
    _
  // Predicated region
  $region18: #{dqn_forward.5} parent=0 // pred_check
    _
  $region19: #{dqn_forward.5} parent=0 // pred_check_branch
    %21 = sbr.rel (0) target = $region21
  $region20: #{dqn_forward.5} parent=0 // pred_region
    _
  $region21: #{dqn_forward.5} parent=0 // pred_fallthru
    _
  // Predicated region
  $region22: #{dqn_forward.5} parent=0 // pred_check
    _
  $region23: #{dqn_forward.5} parent=0 // pred_check_branch
    %23 = sbr.rel (0) target = $region25
  $region24: #{dqn_forward.5} parent=0 // pred_region
    _
  $region25: #{dqn_forward.5} parent=0 // pred_fallthru
    _
  // Predicated region
  $region26: #{dqn_forward.5} parent=0 // pred_check
    _
  $region27: #{dqn_forward.5} parent=0 // pred_check_branch
    %25 = sbr.rel (0) target = $region29
  $region28: #{dqn_forward.5} parent=0 // pred_region
    _
  $region29: #{dqn_forward.5} parent=0 // pred_fallthru
    _
  %v27 = vld [vmem:[%s0] sm:$0xff]
  %v28 = vld [vmem:[%s0 + $0x8] sm:$0xff]
  %v29 = vld [vmem:[%s0 + $0x10] sm:$0xf]
  %v30 = vld [vmem:[%s1] sm:$0xf]
  %v31 = vld [vmem:[%s1 + $0x4] sm:$0xf]
  %v32 = vld [vmem:[%s1 + $0x8] sm:$0xf]
  %v33 = vld [vmem:[%s1 + $0xc] sm:$0xf]
  %v34 = vld [vmem:[%s1 + $0x10] sm:$0xf]
  %v35 = vld [vmem:[%s1 + $0x14] sm:$0xf]
  %v36 = vld [vmem:[%s1 + $0x18] sm:$0xf]
  %v37 = vld [vmem:[%s1 + $0x1c] sm:$0xf]
  %v38 = vld [vmem:[%s1 + $0x20] sm:$0xf]
  %v39 = vld [vmem:[%s1 + $0x24] sm:$0xf]
  %v40 = vld [vmem:[%s1 + $0x28] sm:$0xf]
  %v41 = vld [vmem:[%s1 + $0x2c] sm:$0xf]
  %v42 = vld [vmem:[%s1 + $0x30] sm:$0xf]
  %v43 = vld [vmem:[%s1 + $0x34] sm:$0xf]
  %v44 = vld [vmem:[%s1 + $0x38] sm:$0xf]
  %v45 = vld [vmem:[%s1 + $0x3c] sm:$0xf]
  %v46 = vld [vmem:[%s1 + $0x40] sm:$0xf]
  %v47 = vld [vmem:[%s1 + $0x44] sm:$0xf]
  %v48 = vld [vmem:[%s1 + $0x48] sm:$0xf]
  %v49 = vld [vmem:[%s1 + $0x4c] sm:$0xf]
  %v50 = vld [vmem:[%s1 + $0x50] sm:$0xf]
  %v51 = vld [vmem:[%s1 + $0x54] sm:$0xf]
  %v52 = vld [vmem:[%s1 + $0x58] sm:$0xf]
  %v53 = vld [vmem:[%s1 + $0x5c] sm:$0xf]
  %v54 = vld [vmem:[%s1 + $0x60] sm:$0xf]
  %v55 = vld [vmem:[%s1 + $0x64] sm:$0xf]
  %v56 = vld [vmem:[%s1 + $0x68] sm:$0xf]
  %v57 = vld [vmem:[%s1 + $0x6c] sm:$0xf]
  %v58 = vld [vmem:[%s1 + $0x70] sm:$0xf]
  %v59 = vld [vmem:[%s1 + $0x74] sm:$0xf]
  %v60 = vld [vmem:[%s1 + $0x78] sm:$0xf]
  %v61 = vld [vmem:[%s1 + $0x7c] sm:$0xf]
  %v62 = vld [vmem:[%s1 + $0x80] sm:$0xf]
  %v63 = vld [vmem:[%s1 + $0x84] sm:$0xf]
  %v64 = vld [vmem:[%s1 + $0x88] sm:$0xf]
  %v65 = vld [vmem:[%s1 + $0x8c] sm:$0xf]
  %v66 = vld [vmem:[%s1 + $0x90] sm:$0xf]
  %v67 = vld [vmem:[%s1 + $0x94] sm:$0xf]
  %v68 = vld [vmem:[%s1 + $0x98] sm:$0xf]
  %v69 = vld [vmem:[%s1 + $0x9c] sm:$0xf]
  %v70 = vld [vmem:[%s1 + $0xa0] sm:$0xf]
  %v71 = vld [vmem:[%s1 + $0xa4] sm:$0xf]
  %v72 = vld [vmem:[%s1 + $0xa8] sm:$0xf]
  %v73 = vld [vmem:[%s1 + $0xac] sm:$0xf]
  %v74 = vld [vmem:[%s1 + $0xb0] sm:$0xf]
  %v75 = vld [vmem:[%s1 + $0xb4] sm:$0xf]
  %v76 = vld [vmem:[%s1 + $0xb8] sm:$0xf]
  %v77 = vld [vmem:[%s1 + $0xbc] sm:$0xf]
  %v78 = vld [vmem:[%s1 + $0xc0] sm:$0xf]
  %v79 = vld [vmem:[%s1 + $0xc4] sm:$0xf]
  %v80 = vld [vmem:[%s1 + $0xc8] sm:$0xf]
  %v81 = vld [vmem:[%s1 + $0xcc] sm:$0xf]
  %v82 = vld [vmem:[%s1 + $0xd0] sm:$0xf]
  %v83 = vld [vmem:[%s1 + $0xd4] sm:$0xf]
  %v84 = vld [vmem:[%s1 + $0xd8] sm:$0xf]
  %v85 = vld [vmem:[%s1 + $0xdc] sm:$0xf]
  %v86 = vld [vmem:[%s1 + $0xe0] sm:$0xf]
  %v87 = vld [vmem:[%s1 + $0xe4] sm:$0xf]
  %v88 = vld [vmem:[%s1 + $0xe8] sm:$0xf]
  %v89 = vld [vmem:[%s1 + $0xec] sm:$0xf]
  %v90 = vld [vmem:[%s1 + $0xf0] sm:$0xf]
  %v91 = vld [vmem:[%s1 + $0xf4] sm:$0xf]
  %v92 = vld [vmem:[%s1 + $0xf8] sm:$0xf]
  %v93 = vld [vmem:[%s1 + $0xfc] sm:$0xf]
  %v94 = vld [vmem:[%s1 + $0x100] sm:$0xf]
  %v95 = vld [vmem:[%s1 + $0x104] sm:$0xf]
  %v96 = vld [vmem:[%s1 + $0x108] sm:$0xf]
  %v97 = vld [vmem:[%s1 + $0x10c] sm:$0xf]
  %v98 = vld [vmem:[%s1 + $0x110] sm:$0xf]
  %v99 = vld [vmem:[%s1 + $0x114] sm:$0xf]
  %v100 = vld [vmem:[%s1 + $0x118] sm:$0xf]
  %v101 = vld [vmem:[%s1 + $0x11c] sm:$0xf]
  %v102 = vld [vmem:[%s1 + $0x120] sm:$0xf]
  %v103 = vld [vmem:[%s1 + $0x124] sm:$0xf]
  %v104 = vld [vmem:[%s1 + $0x128] sm:$0xf]
  %v105 = vld [vmem:[%s1 + $0x12c] sm:$0xf]
  %v106 = vld [vmem:[%s1 + $0x130] sm:$0xf]
  %v107 = vld [vmem:[%s1 + $0x134] sm:$0xf]
  %v108 = vld [vmem:[%s1 + $0x138] sm:$0xf]
  %v109 = vld [vmem:[%s1 + $0x13c] sm:$0xf]
  %v110 = vld [vmem:[%s2] sm:$0x1]
  %v112 = vlaneseq
  %v113 = vshrl.u32 %v112, 7
  %v114 = vsub.s32 0, %v113
  %v115 = vrot.slane %v110, %v114
  %v120 = vunpack.c.l.b16 %v27
  %v121 = vunpack.c.h.b16 %v27
  %v122 = vunpack.c.l.b16 %v28
  %v123 = vunpack.c.h.b16 %v28
  %v124 = vunpack.c.l.b16 %v29
  %v125 = vpack.c.b16 %v120, %v120
  %v126 = vpack.c.b16 %v121, %v121
  %v127 = vpack.c.b16 %v122, %v122
  %v128 = vpack.c.b16 %v123, %v123
  %v129 = vpack.c.b16 %v124, %v124
  %v215 = vunpack.c.l.b16 %v30
  %v216 = vunpack.c.l.b16 %v31
  %v217 = vunpack.c.l.b16 %v32
  %v218 = vunpack.c.l.b16 %v33
  %v219 = vunpack.c.l.b16 %v34
  %v220 = vunpack.c.l.b16 %v35
  %v221 = vunpack.c.l.b16 %v36
  %v222 = vunpack.c.l.b16 %v37
  %v223 = vunpack.c.l.b16 %v38
  %v224 = vunpack.c.l.b16 %v39
  %v225 = vunpack.c.l.b16 %v40
  %v226 = vunpack.c.l.b16 %v41
  %v227 = vunpack.c.l.b16 %v42
  %v228 = vunpack.c.l.b16 %v43
  %v229 = vunpack.c.l.b16 %v44
  %v230 = vunpack.c.l.b16 %v45
  %v231 = vunpack.c.l.b16 %v46
  %v232 = vunpack.c.l.b16 %v47
  %v233 = vunpack.c.l.b16 %v48
  %v234 = vunpack.c.l.b16 %v49
  %v235 = vunpack.c.l.b16 %v50
  %v236 = vunpack.c.l.b16 %v51
  %v237 = vunpack.c.l.b16 %v52
  %v238 = vunpack.c.l.b16 %v53
  %v239 = vunpack.c.l.b16 %v54
  %v240 = vunpack.c.l.b16 %v55
  %v241 = vunpack.c.l.b16 %v56
  %v242 = vunpack.c.l.b16 %v57
  %v243 = vunpack.c.l.b16 %v58
  %v244 = vunpack.c.l.b16 %v59
  %v245 = vunpack.c.l.b16 %v60
  %v246 = vunpack.c.l.b16 %v61
  %v247 = vunpack.c.l.b16 %v62
  %v248 = vunpack.c.l.b16 %v63
  %v249 = vunpack.c.l.b16 %v64
  %v250 = vunpack.c.l.b16 %v65
  %v251 = vunpack.c.l.b16 %v66
  %v252 = vunpack.c.l.b16 %v67
  %v253 = vunpack.c.l.b16 %v68
  %v254 = vunpack.c.l.b16 %v69
  %v255 = vunpack.c.l.b16 %v70
  %v256 = vunpack.c.l.b16 %v71
  %v257 = vunpack.c.l.b16 %v72
  %v258 = vunpack.c.l.b16 %v73
  %v259 = vunpack.c.l.b16 %v74
  %v260 = vunpack.c.l.b16 %v75
  %v261 = vunpack.c.l.b16 %v76
  %v262 = vunpack.c.l.b16 %v77
  %v263 = vunpack.c.l.b16 %v78
  %v264 = vunpack.c.l.b16 %v79
  %v265 = vunpack.c.l.b16 %v80
  %v266 = vunpack.c.l.b16 %v81
  %v267 = vunpack.c.l.b16 %v82
  %v268 = vunpack.c.l.b16 %v83
  %v269 = vunpack.c.l.b16 %v84
  %v270 = vunpack.c.l.b16 %v85
  %v271 = vunpack.c.l.b16 %v86
  %v272 = vunpack.c.l.b16 %v87
  %v273 = vunpack.c.l.b16 %v88
  %v274 = vunpack.c.l.b16 %v89
  %v275 = vunpack.c.l.b16 %v90
  %v276 = vunpack.c.l.b16 %v91
  %v277 = vunpack.c.l.b16 %v92
  %v278 = vunpack.c.l.b16 %v93
  %v279 = vunpack.c.l.b16 %v94
  %v280 = vunpack.c.l.b16 %v95
  %v281 = vunpack.c.l.b16 %v96
  %v282 = vunpack.c.l.b16 %v97
  %v283 = vunpack.c.l.b16 %v98
  %v284 = vunpack.c.l.b16 %v99
  %v285 = vunpack.c.l.b16 %v100
  %v286 = vunpack.c.l.b16 %v101
  %v287 = vunpack.c.l.b16 %v102
  %v288 = vunpack.c.l.b16 %v103
  %v289 = vunpack.c.l.b16 %v104
  %v290 = vunpack.c.l.b16 %v105
  %v291 = vunpack.c.l.b16 %v106
  %v292 = vunpack.c.l.b16 %v107
  %v293 = vunpack.c.l.b16 %v108
  %v294 = vunpack.c.l.b16 %v109
  %v295 = vpack.c.b16 %v216, %v215
  %v296 = vpack.c.b16 %v218, %v217
  %v297 = vpack.c.b16 %v220, %v219
  %v298 = vpack.c.b16 %v222, %v221
  %v299 = vpack.c.b16 %v224, %v223
  %v300 = vpack.c.b16 %v226, %v225
  %v301 = vpack.c.b16 %v228, %v227
  %v302 = vpack.c.b16 %v230, %v229
  %v303 = vpack.c.b16 %v232, %v231
  %v304 = vpack.c.b16 %v234, %v233
  %v305 = vpack.c.b16 %v236, %v235
  %v306 = vpack.c.b16 %v238, %v237
  %v307 = vpack.c.b16 %v240, %v239
  %v308 = vpack.c.b16 %v242, %v241
  %v309 = vpack.c.b16 %v244, %v243
  %v310 = vpack.c.b16 %v246, %v245
  %v311 = vpack.c.b16 %v248, %v247
  %v312 = vpack.c.b16 %v250, %v249
  %v313 = vpack.c.b16 %v252, %v251
  %v314 = vpack.c.b16 %v254, %v253
  %v315 = vpack.c.b16 %v256, %v255
  %v316 = vpack.c.b16 %v258, %v257
  %v317 = vpack.c.b16 %v260, %v259
  %v318 = vpack.c.b16 %v262, %v261
  %v319 = vpack.c.b16 %v264, %v263
  %v320 = vpack.c.b16 %v266, %v265
  %v321 = vpack.c.b16 %v268, %v267
  %v322 = vpack.c.b16 %v270, %v269
  %v323 = vpack.c.b16 %v272, %v271
  %v324 = vpack.c.b16 %v274, %v273
  %v325 = vpack.c.b16 %v276, %v275
  %v326 = vpack.c.b16 %v278, %v277
  %v327 = vpack.c.b16 %v280, %v279
  %v328 = vpack.c.b16 %v282, %v281
  %v329 = vpack.c.b16 %v284, %v283
  %v330 = vpack.c.b16 %v286, %v285
  %v331 = vpack.c.b16 %v288, %v287
  %v332 = vpack.c.b16 %v290, %v289
  %v333 = vpack.c.b16 %v292, %v291
  %v334 = vpack.c.b16 %v294, %v293
  %375 = vmatprep.subr.bf16.mxu0 0
  %376 = vmatpush1.bf16.msra.mxu0 %v295
  %377 = vmatprep.subr.bf16.mxu0 0
  %378 = vmatpush1.bf16.msra.mxu0 %v296
  %379 = vmatprep.subr.bf16.mxu0 0
  %380 = vmatpush1.bf16.msra.mxu0 %v297
  %381 = vmatprep.subr.bf16.mxu0 0
  %382 = vmatpush1.bf16.msra.mxu0 %v298
  %383 = vmatprep.subr.bf16.mxu0 0
  %384 = vmatpush1.bf16.msra.mxu0 %v299
  %385 = vmatprep.subr.bf16.mxu0 0
  %386 = vmatpush1.bf16.msra.mxu0 %v300
  %387 = vmatprep.subr.bf16.mxu0 0
  %388 = vmatpush1.bf16.msra.mxu0 %v301
  %389 = vmatprep.subr.bf16.mxu0 0
  %390 = vmatpush1.bf16.msra.mxu0 %v302
  %391 = vmatprep.subr.bf16.mxu0 0
  %392 = vmatpush1.bf16.msra.mxu0 %v303
  %393 = vmatprep.subr.bf16.mxu0 0
  %394 = vmatpush1.bf16.msra.mxu0 %v304
  %395 = vmatprep.subr.bf16.mxu0 0
  %396 = vmatpush1.bf16.msra.mxu0 %v305
  %397 = vmatprep.subr.bf16.mxu0 0
  %398 = vmatpush1.bf16.msra.mxu0 %v306
  %399 = vmatprep.subr.bf16.mxu0 0
  %400 = vmatpush1.bf16.msra.mxu0 %v307
  %401 = vmatprep.subr.bf16.mxu0 0
  %402 = vmatpush1.bf16.msra.mxu0 %v308
  %403 = vmatprep.subr.bf16.mxu0 0
  %404 = vmatpush1.bf16.msra.mxu0 %v309
  %405 = vmatprep.subr.bf16.mxu0 0
  %406 = vmatpush1.bf16.msra.mxu0 %v310
  %407 = vmatprep.mubr.bf16.mxu0 %v126
  %408 = vmatmul.mubr.bf16.gmra.mrb[0].mxu0 %v125
  %v409 = vpop.f32.mrb[0].mxu0
  %v410 = vadd.f32 %v115, %v409
  %v411 = vpop.f32.mrb[0].mxu0
  %v412 = vpop.f32.mrb[0].mxu0
  %v413 = vpop.f32.mrb[0].mxu0
  %414 = vdwg.mxu0
  %415 = vmatprep.subr.bf16.mxu0 0
  %416 = vmatpush1.bf16.msra.mxu0 %v311
  %417 = vmatprep.subr.bf16.mxu0 0
  %418 = vmatpush1.bf16.msra.mxu0 %v312
  %419 = vmatprep.subr.bf16.mxu0 0
  %420 = vmatpush1.bf16.msra.mxu0 %v313
  %421 = vmatprep.subr.bf16.mxu0 0
  %422 = vmatpush1.bf16.msra.mxu0 %v314
  %423 = vmatprep.subr.bf16.mxu0 0
  %424 = vmatpush1.bf16.msra.mxu0 %v315
  %425 = vmatprep.subr.bf16.mxu0 0
  %426 = vmatpush1.bf16.msra.mxu0 %v316
  %427 = vmatprep.subr.bf16.mxu0 0
  %428 = vmatpush1.bf16.msra.mxu0 %v317
  %429 = vmatprep.subr.bf16.mxu0 0
  %430 = vmatpush1.bf16.msra.mxu0 %v318
  %431 = vmatprep.subr.bf16.mxu0 0
  %432 = vmatpush1.bf16.msra.mxu0 %v319
  %433 = vmatprep.subr.bf16.mxu0 0
  %434 = vmatpush1.bf16.msra.mxu0 %v320
  %435 = vmatprep.subr.bf16.mxu0 0
  %436 = vmatpush1.bf16.msra.mxu0 %v321
  %437 = vmatprep.subr.bf16.mxu0 0
  %438 = vmatpush1.bf16.msra.mxu0 %v322
  %439 = vmatprep.subr.bf16.mxu0 0
  %440 = vmatpush1.bf16.msra.mxu0 %v323
  %441 = vmatprep.subr.bf16.mxu0 0
  %442 = vmatpush1.bf16.msra.mxu0 %v324
  %443 = vmatprep.subr.bf16.mxu0 0
  %444 = vmatpush1.bf16.msra.mxu0 %v325
  %445 = vmatprep.subr.bf16.mxu0 0
  %446 = vmatpush1.bf16.msra.mxu0 %v326
  %447 = vmatprep.mubr.bf16.mxu0 %v128
  %448 = vmatmul.mubr.bf16.gmra.mrb[0].mxu0 %v127
  %v449 = vpop.f32.mrb[0].mxu0
  %v450 = vadd.f32 %v410, %v449
  %v451 = vpop.f32.mrb[0].mxu0
  %v452 = vpop.f32.mrb[0].mxu0
  %v453 = vpop.f32.mrb[0].mxu0
  %454 = vdwg.mxu0
  %455 = vmatprep.subr.bf16.mxu0 0
  %456 = vmatpush1.bf16.msra.mxu0 %v327
  %457 = vmatprep.subr.bf16.mxu0 0
  %458 = vmatpush1.bf16.msra.mxu0 %v328
  %459 = vmatprep.subr.bf16.mxu0 0
  %460 = vmatpush1.bf16.msra.mxu0 %v329
  %461 = vmatprep.subr.bf16.mxu0 0
  %462 = vmatpush1.bf16.msra.mxu0 %v330
  %463 = vmatprep.subr.bf16.mxu0 0
  %464 = vmatpush1.bf16.msra.mxu0 %v331
  %465 = vmatprep.subr.bf16.mxu0 0
  %466 = vmatpush1.bf16.msra.mxu0 %v332
  %467 = vmatprep.subr.bf16.mxu0 0
  %468 = vmatpush1.bf16.msra.mxu0 %v333
  %469 = vmatprep.subr.bf16.mxu0 0
  %470 = vmatpush1.bf16.msra.mxu0 %v334
  %471 = vmatprep.subr.bf16.mxu0 0
  %472 = vmatpush1.bf16.msra.mxu0 0
  %473 = vmatprep.subr.bf16.mxu0 0
  %474 = vmatpush1.bf16.msra.mxu0 0
  %475 = vmatprep.subr.bf16.mxu0 0
  %476 = vmatpush1.bf16.msra.mxu0 0
  %477 = vmatprep.subr.bf16.mxu0 0
  %478 = vmatpush1.bf16.msra.mxu0 0
  %479 = vmatprep.subr.bf16.mxu0 0
  %480 = vmatpush1.bf16.msra.mxu0 0
  %481 = vmatprep.subr.bf16.mxu0 0
  %482 = vmatpush1.bf16.msra.mxu0 0
  %483 = vmatprep.subr.bf16.mxu0 0
  %484 = vmatpush1.bf16.msra.mxu0 0
  %485 = vmatprep.subr.bf16.mxu0 0
  %486 = vmatpush1.bf16.msra.mxu0 0
  %487 = vmatprep.mubr.bf16.mxu0 0
  %488 = vmatmul.mubr.bf16.gmra.mrb[0].mxu0 %v129
  %v489 = vpop.f32.mrb[0].mxu0
  %v490 = vadd.f32 %v450, %v489
  %v491 = vpop.f32.mrb[0].mxu0
  %v492 = vpop.f32.mrb[0].mxu0
  %v493 = vpop.f32.mrb[0].mxu0
  %494 = vdwg.mxu0
  %v495 = vmax.f32 %v490, 0.0
  %v496 = vpack.c.bf16 %v495, %v495
  %v497 = vld [vmem:[%s3] sm:$0xff]
  %v498 = vld [vmem:[%s3 + $0x8] sm:$0xff]
  %v499 = vld [vmem:[%s3 + $0x10] sm:$0xff]
  %v500 = vld [vmem:[%s3 + $0x18] sm:$0xff]
  %v501 = vld [vmem:[%s3 + $0x20] sm:$0xff]
  %v502 = vld [vmem:[%s3 + $0x28] sm:$0xff]
  %v503 = vld [vmem:[%s3 + $0x30] sm:$0xff]
  %v504 = vld [vmem:[%s3 + $0x38] sm:$0xff]
  %v505 = vld [vmem:[%s3 + $0x40] sm:$0xff]
  %v506 = vld [vmem:[%s3 + $0x48] sm:$0xff]
  %v507 = vld [vmem:[%s3 + $0x50] sm:$0xff]
  %v508 = vld [vmem:[%s3 + $0x58] sm:$0xff]
  %v509 = vld [vmem:[%s3 + $0x60] sm:$0xff]
  %v510 = vld [vmem:[%s3 + $0x68] sm:$0xff]
  %v511 = vld [vmem:[%s3 + $0x70] sm:$0xff]
  %v512 = vld [vmem:[%s3 + $0x78] sm:$0xff]
  %v513 = vld [vmem:[%s3 + $0x80] sm:$0xff]
  %v514 = vld [vmem:[%s3 + $0x88] sm:$0xff]
  %v515 = vld [vmem:[%s3 + $0x90] sm:$0xff]
  %v516 = vld [vmem:[%s3 + $0x98] sm:$0xff]
  %v517 = vld [vmem:[%s3 + $0xa0] sm:$0xff]
  %v518 = vld [vmem:[%s3 + $0xa8] sm:$0xff]
  %v519 = vld [vmem:[%s3 + $0xb0] sm:$0xff]
  %v520 = vld [vmem:[%s3 + $0xb8] sm:$0xff]
  %v521 = vld [vmem:[%s3 + $0xc0] sm:$0xff]
  %v522 = vld [vmem:[%s3 + $0xc8] sm:$0xff]
  %v523 = vld [vmem:[%s3 + $0xd0] sm:$0xff]
  %v524 = vld [vmem:[%s3 + $0xd8] sm:$0xff]
  %v525 = vld [vmem:[%s3 + $0xe0] sm:$0xff]
  %v526 = vld [vmem:[%s3 + $0xe8] sm:$0xff]
  %v527 = vld [vmem:[%s3 + $0xf0] sm:$0xff]
  %v528 = vld [vmem:[%s3 + $0xf8] sm:$0xff]
  %v529 = vld [vmem:[%s4] sm:$0xf]
  %v531 = vlaneseq
  %v532 = vshrl.u32 %v531, 7
  %v533 = vsub.s32 0, %v532
  %v534 = vrot.slane %v529, %v533
  %v535 = vlaneseq
  %v536 = vshrl.u32 %v535, 7
  %v537 = vsub.s32 1, %v536
  %v538 = vrot.slane %v529, %v537
  %v539 = vlaneseq
  %v540 = vshrl.u32 %v539, 7
  %v541 = vsub.s32 2, %v540
  %v542 = vrot.slane %v529, %v541
  %v543 = vlaneseq
  %v544 = vshrl.u32 %v543, 7
  %v545 = vsub.s32 3, %v544
  %v546 = vrot.slane %v529, %v545
  %v583 = vunpack.c.l.b16 %v497
  %v584 = vunpack.c.h.b16 %v497
  %v585 = vunpack.c.l.b16 %v498
  %v586 = vunpack.c.h.b16 %v498
  %v587 = vunpack.c.l.b16 %v499
  %v588 = vunpack.c.h.b16 %v499
  %v589 = vunpack.c.l.b16 %v500
  %v590 = vunpack.c.h.b16 %v500
  %v591 = vunpack.c.l.b16 %v501
  %v592 = vunpack.c.h.b16 %v501
  %v593 = vunpack.c.l.b16 %v502
  %v594 = vunpack.c.h.b16 %v502
  %v595 = vunpack.c.l.b16 %v503
  %v596 = vunpack.c.h.b16 %v503
  %v597 = vunpack.c.l.b16 %v504
  %v598 = vunpack.c.h.b16 %v504
  %v599 = vunpack.c.l.b16 %v505
  %v600 = vunpack.c.h.b16 %v505
  %v601 = vunpack.c.l.b16 %v506
  %v602 = vunpack.c.h.b16 %v506
  %v603 = vunpack.c.l.b16 %v507
  %v604 = vunpack.c.h.b16 %v507
  %v605 = vunpack.c.l.b16 %v508
  %v606 = vunpack.c.h.b16 %v508
  %v607 = vunpack.c.l.b16 %v509
  %v608 = vunpack.c.h.b16 %v509
  %v609 = vunpack.c.l.b16 %v510
  %v610 = vunpack.c.h.b16 %v510
  %v611 = vunpack.c.l.b16 %v511
  %v612 = vunpack.c.h.b16 %v511
  %v613 = vunpack.c.l.b16 %v512
  %v614 = vunpack.c.h.b16 %v512
  %v615 = vunpack.c.l.b16 %v513
  %v616 = vunpack.c.h.b16 %v513
  %v617 = vunpack.c.l.b16 %v514
  %v618 = vunpack.c.h.b16 %v514
  %v619 = vunpack.c.l.b16 %v515
  %v620 = vunpack.c.h.b16 %v515
  %v621 = vunpack.c.l.b16 %v516
  %v622 = vunpack.c.h.b16 %v516
  %v623 = vunpack.c.l.b16 %v517
  %v624 = vunpack.c.h.b16 %v517
  %v625 = vunpack.c.l.b16 %v518
  %v626 = vunpack.c.h.b16 %v518
  %v627 = vunpack.c.l.b16 %v519
  %v628 = vunpack.c.h.b16 %v519
  %v629 = vunpack.c.l.b16 %v520
  %v630 = vunpack.c.h.b16 %v520
  %v631 = vunpack.c.l.b16 %v521
  %v632 = vunpack.c.h.b16 %v521
  %v633 = vunpack.c.l.b16 %v522
  %v634 = vunpack.c.h.b16 %v522
  %v635 = vunpack.c.l.b16 %v523
  %v636 = vunpack.c.h.b16 %v523
  %v637 = vunpack.c.l.b16 %v524
  %v638 = vunpack.c.h.b16 %v524
  %v639 = vunpack.c.l.b16 %v525
  %v640 = vunpack.c.h.b16 %v525
  %v641 = vunpack.c.l.b16 %v526
  %v642 = vunpack.c.h.b16 %v526
  %v643 = vunpack.c.l.b16 %v527
  %v644 = vunpack.c.h.b16 %v527
  %v645 = vunpack.c.l.b16 %v528
  %v646 = vunpack.c.h.b16 %v528
  %v647 = vpack.c.b16 %v587, %v583
  %v648 = vpack.c.b16 %v588, %v584
  %v649 = vpack.c.b16 %v589, %v585
  %v650 = vpack.c.b16 %v590, %v586
  %v651 = vpack.c.b16 %v595, %v591
  %v652 = vpack.c.b16 %v596, %v592
  %v653 = vpack.c.b16 %v597, %v593
  %v654 = vpack.c.b16 %v598, %v594
  %v655 = vpack.c.b16 %v603, %v599
  %v656 = vpack.c.b16 %v604, %v600
  %v657 = vpack.c.b16 %v605, %v601
  %v658 = vpack.c.b16 %v606, %v602
  %v659 = vpack.c.b16 %v611, %v607
  %v660 = vpack.c.b16 %v612, %v608
  %v661 = vpack.c.b16 %v613, %v609
  %v662 = vpack.c.b16 %v614, %v610
  %v663 = vpack.c.b16 %v619, %v615
  %v664 = vpack.c.b16 %v620, %v616
  %v665 = vpack.c.b16 %v621, %v617
  %v666 = vpack.c.b16 %v622, %v618
  %v667 = vpack.c.b16 %v627, %v623
  %v668 = vpack.c.b16 %v628, %v624
  %v669 = vpack.c.b16 %v629, %v625
  %v670 = vpack.c.b16 %v630, %v626
  %v671 = vpack.c.b16 %v635, %v631
  %v672 = vpack.c.b16 %v636, %v632
  %v673 = vpack.c.b16 %v637, %v633
  %v674 = vpack.c.b16 %v638, %v634
  %v675 = vpack.c.b16 %v643, %v639
  %v676 = vpack.c.b16 %v644, %v640
  %v677 = vpack.c.b16 %v645, %v641
  %v678 = vpack.c.b16 %v646, %v642
  %711 = vmatprep.subr.bf16.mxu0 %v648
  %712 = vmatpush1.bf16.msra.mxu0 %v647
  %713 = vmatprep.subr.bf16.mxu0 %v652
  %714 = vmatpush1.bf16.msra.mxu0 %v651
  %715 = vmatprep.subr.bf16.mxu0 %v656
  %716 = vmatpush1.bf16.msra.mxu0 %v655
  %717 = vmatprep.subr.bf16.mxu0 %v660
  %718 = vmatpush1.bf16.msra.mxu0 %v659
  %719 = vmatprep.subr.bf16.mxu0 %v664
  %720 = vmatpush1.bf16.msra.mxu0 %v663
  %721 = vmatprep.subr.bf16.mxu0 %v668
  %722 = vmatpush1.bf16.msra.mxu0 %v667
  %723 = vmatprep.subr.bf16.mxu0 %v672
  %724 = vmatpush1.bf16.msra.mxu0 %v671
  %725 = vmatprep.subr.bf16.mxu0 %v676
  %726 = vmatpush1.bf16.msra.mxu0 %v675
  %727 = vmatprep.subr.bf16.mxu0 0
  %728 = vmatpush1.bf16.msra.mxu0 0
  %729 = vmatprep.subr.bf16.mxu0 0
  %730 = vmatpush1.bf16.msra.mxu0 0
  %731 = vmatprep.subr.bf16.mxu0 0
  %732 = vmatpush1.bf16.msra.mxu0 0
  %733 = vmatprep.subr.bf16.mxu0 0
  %734 = vmatpush1.bf16.msra.mxu0 0
  %735 = vmatprep.subr.bf16.mxu0 0
  %736 = vmatpush1.bf16.msra.mxu0 0
  %737 = vmatprep.subr.bf16.mxu0 0
  %738 = vmatpush1.bf16.msra.mxu0 0
  %739 = vmatprep.subr.bf16.mxu0 0
  %740 = vmatpush1.bf16.msra.mxu0 0
  %741 = vmatprep.subr.bf16.mxu0 0
  %742 = vmatpush1.bf16.msra.mxu0 0
  %743 = vmatprep.mubr.bf16.mxu0 0
  %744 = vmatmul.mubr.bf16.gmra.mrb[0].mxu0 %v496
  %v745 = vpop.f32.mrb[0].mxu0
  %v746 = vadd.f32 %v534, %v745
  %v747 = vpop.f32.mrb[0].mxu0
  %v748 = vadd.f32 %v538, %v747
  %v749 = vpop.f32.mrb[0].mxu0
  %v750 = vpop.f32.mrb[0].mxu0
  %751 = vdwg.mxu0
  %752 = vmatprep.subr.bf16.mxu0 %v650
  %753 = vmatpush1.bf16.msra.mxu0 %v649
  %754 = vmatprep.subr.bf16.mxu0 %v654
  %755 = vmatpush1.bf16.msra.mxu0 %v653
  %756 = vmatprep.subr.bf16.mxu0 %v658
  %757 = vmatpush1.bf16.msra.mxu0 %v657
  %758 = vmatprep.subr.bf16.mxu0 %v662
  %759 = vmatpush1.bf16.msra.mxu0 %v661
  %760 = vmatprep.subr.bf16.mxu0 %v666
  %761 = vmatpush1.bf16.msra.mxu0 %v665
  %762 = vmatprep.subr.bf16.mxu0 %v670
  %763 = vmatpush1.bf16.msra.mxu0 %v669
  %764 = vmatprep.subr.bf16.mxu0 %v674
  %765 = vmatpush1.bf16.msra.mxu0 %v673
  %766 = vmatprep.subr.bf16.mxu0 %v678
  %767 = vmatpush1.bf16.msra.mxu0 %v677
  %768 = vmatprep.subr.bf16.mxu0 0
  %769 = vmatpush1.bf16.msra.mxu0 0
  %770 = vmatprep.subr.bf16.mxu0 0
  %771 = vmatpush1.bf16.msra.mxu0 0
  %772 = vmatprep.subr.bf16.mxu0 0
  %773 = vmatpush1.bf16.msra.mxu0 0
  %774 = vmatprep.subr.bf16.mxu0 0
  %775 = vmatpush1.bf16.msra.mxu0 0
  %776 = vmatprep.subr.bf16.mxu0 0
  %777 = vmatpush1.bf16.msra.mxu0 0
  %778 = vmatprep.subr.bf16.mxu0 0
  %779 = vmatpush1.bf16.msra.mxu0 0
  %780 = vmatprep.subr.bf16.mxu0 0
  %781 = vmatpush1.bf16.msra.mxu0 0
  %782 = vmatprep.subr.bf16.mxu0 0
  %783 = vmatpush1.bf16.msra.mxu0 0
  %784 = vmatprep.mubr.bf16.mxu0 0
  %785 = vmatmul.mubr.bf16.gmra.mrb[0].mxu0 %v496
  %v786 = vpop.f32.mrb[0].mxu0
  %v787 = vadd.f32 %v542, %v786
  %v788 = vpop.f32.mrb[0].mxu0
  %v789 = vadd.f32 %v546, %v788
  %v790 = vpop.f32.mrb[0].mxu0
  %v791 = vpop.f32.mrb[0].mxu0
  %792 = vdwg.mxu0
  %v793 = vmax.f32 %v746, 0.0
  %v794 = vmax.f32 %v748, 0.0
  %v795 = vmax.f32 %v787, 0.0
  %v796 = vmax.f32 %v789, 0.0
  %v797 = vpack.c.bf16 %v793, %v793
  %v798 = vpack.c.bf16 %v794, %v794
  %v799 = vpack.c.bf16 %v795, %v795
  %v800 = vpack.c.bf16 %v796, %v796
  %v801 = vld [vmem:[%s5] sm:$0xf]
  %v802 = vld [vmem:[%s5 + $0x4] sm:$0xf]
  %v803 = vld [vmem:[%s5 + $0x8] sm:$0xf]
  %v804 = vld [vmem:[%s5 + $0xc] sm:$0xf]
  %v805 = vld [vmem:[%s5 + $0x10] sm:$0xf]
  %v806 = vld [vmem:[%s5 + $0x14] sm:$0xf]
  %v807 = vld [vmem:[%s5 + $0x18] sm:$0xf]
  %v808 = vld [vmem:[%s5 + $0x1c] sm:$0xf]
  %v809 = vld [vmem:[%s5 + $0x20] sm:$0xf]
  %v810 = vld [vmem:[%s5 + $0x24] sm:$0xf]
  %v811 = vld [vmem:[%s5 + $0x28] sm:$0xf]
  %v812 = vld [vmem:[%s5 + $0x2c] sm:$0xf]
  %v813 = vld [vmem:[%s5 + $0x30] sm:$0xf]
  %v814 = vld [vmem:[%s5 + $0x34] sm:$0xf]
  %v815 = vld [vmem:[%s5 + $0x38] sm:$0xf]
  %v816 = vld [vmem:[%s5 + $0x3c] sm:$0xf]
  %v817 = vld [vmem:[%s5 + $0x40] sm:$0xf]
  %v818 = vld [vmem:[%s5 + $0x44] sm:$0xf]
  %v819 = vld [vmem:[%s5 + $0x48] sm:$0xf]
  %v820 = vld [vmem:[%s5 + $0x4c] sm:$0xf]
  %v821 = vld [vmem:[%s5 + $0x50] sm:$0xf]
  %v822 = vld [vmem:[%s5 + $0x54] sm:$0xf]
  %v823 = vld [vmem:[%s5 + $0x58] sm:$0xf]
  %v824 = vld [vmem:[%s5 + $0x5c] sm:$0xf]
  %v825 = vld [vmem:[%s5 + $0x60] sm:$0xf]
  %v826 = vld [vmem:[%s5 + $0x64] sm:$0xf]
  %v827 = vld [vmem:[%s5 + $0x68] sm:$0xf]
  %v828 = vld [vmem:[%s5 + $0x6c] sm:$0xf]
  %v829 = vld [vmem:[%s5 + $0x70] sm:$0xf]
  %v830 = vld [vmem:[%s5 + $0x74] sm:$0xf]
  %v831 = vld [vmem:[%s5 + $0x78] sm:$0xf]
  %v832 = vld [vmem:[%s5 + $0x7c] sm:$0xf]
  %v833 = vld [vmem:[%s5 + $0x80] sm:$0xf]
  %v834 = vld [vmem:[%s5 + $0x84] sm:$0xf]
  %v835 = vld [vmem:[%s5 + $0x88] sm:$0xf]
  %v836 = vld [vmem:[%s5 + $0x8c] sm:$0xf]
  %v837 = vld [vmem:[%s5 + $0x90] sm:$0xf]
  %v838 = vld [vmem:[%s5 + $0x94] sm:$0xf]
  %v839 = vld [vmem:[%s5 + $0x98] sm:$0xf]
  %v840 = vld [vmem:[%s5 + $0x9c] sm:$0xf]
  %v841 = vld [vmem:[%s5 + $0xa0] sm:$0xf]
  %v842 = vld [vmem:[%s5 + $0xa4] sm:$0xf]
  %v843 = vld [vmem:[%s5 + $0xa8] sm:$0xf]
  %v844 = vld [vmem:[%s5 + $0xac] sm:$0xf]
  %v845 = vld [vmem:[%s5 + $0xb0] sm:$0xf]
  %v846 = vld [vmem:[%s5 + $0xb4] sm:$0xf]
  %v847 = vld [vmem:[%s5 + $0xb8] sm:$0xf]
  %v848 = vld [vmem:[%s5 + $0xbc] sm:$0xf]
  %v849 = vld [vmem:[%s5 + $0xc0] sm:$0xf]
  %v850 = vld [vmem:[%s5 + $0xc4] sm:$0xf]
  %v851 = vld [vmem:[%s5 + $0xc8] sm:$0xf]
  %v852 = vld [vmem:[%s5 + $0xcc] sm:$0xf]
  %v853 = vld [vmem:[%s5 + $0xd0] sm:$0xf]
  %v854 = vld [vmem:[%s5 + $0xd4] sm:$0xf]
  %v855 = vld [vmem:[%s5 + $0xd8] sm:$0xf]
  %v856 = vld [vmem:[%s5 + $0xdc] sm:$0xf]
  %v857 = vld [vmem:[%s5 + $0xe0] sm:$0xf]
  %v858 = vld [vmem:[%s5 + $0xe4] sm:$0xf]
  %v859 = vld [vmem:[%s5 + $0xe8] sm:$0xf]
  %v860 = vld [vmem:[%s5 + $0xec] sm:$0xf]
  %v861 = vld [vmem:[%s5 + $0xf0] sm:$0xf]
  %v862 = vld [vmem:[%s5 + $0xf4] sm:$0xf]
  %v863 = vld [vmem:[%s5 + $0xf8] sm:$0xf]
  %v864 = vld [vmem:[%s5 + $0xfc] sm:$0xf]
  %v865 = vld [vmem:[%s6] sm:$0x1]
  %v867 = vlaneseq
  %v868 = vshrl.u32 %v867, 7
  %v869 = vsub.s32 0, %v868
  %v870 = vrot.slane %v865, %v869
  %v936 = vunpack.c.l.b16 %v801
  %v937 = vunpack.c.l.b16 %v802
  %v938 = vunpack.c.l.b16 %v803
  %v939 = vunpack.c.l.b16 %v804
  %v940 = vunpack.c.l.b16 %v805
  %v941 = vunpack.c.l.b16 %v806
  %v942 = vunpack.c.l.b16 %v807
  %v943 = vunpack.c.l.b16 %v808
  %v944 = vunpack.c.l.b16 %v809
  %v945 = vunpack.c.l.b16 %v810
  %v946 = vunpack.c.l.b16 %v811
  %v947 = vunpack.c.l.b16 %v812
  %v948 = vunpack.c.l.b16 %v813
  %v949 = vunpack.c.l.b16 %v814
  %v950 = vunpack.c.l.b16 %v815
  %v951 = vunpack.c.l.b16 %v816
  %v952 = vunpack.c.l.b16 %v817
  %v953 = vunpack.c.l.b16 %v818
  %v954 = vunpack.c.l.b16 %v819
  %v955 = vunpack.c.l.b16 %v820
  %v956 = vunpack.c.l.b16 %v821
  %v957 = vunpack.c.l.b16 %v822
  %v958 = vunpack.c.l.b16 %v823
  %v959 = vunpack.c.l.b16 %v824
  %v960 = vunpack.c.l.b16 %v825
  %v961 = vunpack.c.l.b16 %v826
  %v962 = vunpack.c.l.b16 %v827
  %v963 = vunpack.c.l.b16 %v828
  %v964 = vunpack.c.l.b16 %v829
  %v965 = vunpack.c.l.b16 %v830
  %v966 = vunpack.c.l.b16 %v831
  %v967 = vunpack.c.l.b16 %v832
  %v968 = vunpack.c.l.b16 %v833
  %v969 = vunpack.c.l.b16 %v834
  %v970 = vunpack.c.l.b16 %v835
  %v971 = vunpack.c.l.b16 %v836
  %v972 = vunpack.c.l.b16 %v837
  %v973 = vunpack.c.l.b16 %v838
  %v974 = vunpack.c.l.b16 %v839
  %v975 = vunpack.c.l.b16 %v840
  %v976 = vunpack.c.l.b16 %v841
  %v977 = vunpack.c.l.b16 %v842
  %v978 = vunpack.c.l.b16 %v843
  %v979 = vunpack.c.l.b16 %v844
  %v980 = vunpack.c.l.b16 %v845
  %v981 = vunpack.c.l.b16 %v846
  %v982 = vunpack.c.l.b16 %v847
  %v983 = vunpack.c.l.b16 %v848
  %v984 = vunpack.c.l.b16 %v849
  %v985 = vunpack.c.l.b16 %v850
  %v986 = vunpack.c.l.b16 %v851
  %v987 = vunpack.c.l.b16 %v852
  %v988 = vunpack.c.l.b16 %v853
  %v989 = vunpack.c.l.b16 %v854
  %v990 = vunpack.c.l.b16 %v855
  %v991 = vunpack.c.l.b16 %v856
  %v992 = vunpack.c.l.b16 %v857
  %v993 = vunpack.c.l.b16 %v858
  %v994 = vunpack.c.l.b16 %v859
  %v995 = vunpack.c.l.b16 %v860
  %v996 = vunpack.c.l.b16 %v861
  %v997 = vunpack.c.l.b16 %v862
  %v998 = vunpack.c.l.b16 %v863
  %v999 = vunpack.c.l.b16 %v864
  %v1000 = vpack.c.b16 %v937, %v936
  %v1001 = vpack.c.b16 %v939, %v938
  %v1002 = vpack.c.b16 %v941, %v940
  %v1003 = vpack.c.b16 %v943, %v942
  %v1004 = vpack.c.b16 %v945, %v944
  %v1005 = vpack.c.b16 %v947, %v946
  %v1006 = vpack.c.b16 %v949, %v948
  %v1007 = vpack.c.b16 %v951, %v950
  %v1008 = vpack.c.b16 %v953, %v952
  %v1009 = vpack.c.b16 %v955, %v954
  %v1010 = vpack.c.b16 %v957, %v956
  %v1011 = vpack.c.b16 %v959, %v958
  %v1012 = vpack.c.b16 %v961, %v960
  %v1013 = vpack.c.b16 %v963, %v962
  %v1014 = vpack.c.b16 %v965, %v964
  %v1015 = vpack.c.b16 %v967, %v966
  %v1016 = vpack.c.b16 %v969, %v968
  %v1017 = vpack.c.b16 %v971, %v970
  %v1018 = vpack.c.b16 %v973, %v972
  %v1019 = vpack.c.b16 %v975, %v974
  %v1020 = vpack.c.b16 %v977, %v976
  %v1021 = vpack.c.b16 %v979, %v978
  %v1022 = vpack.c.b16 %v981, %v980
  %v1023 = vpack.c.b16 %v983, %v982
  %v1024 = vpack.c.b16 %v985, %v984
  %v1025 = vpack.c.b16 %v987, %v986
  %v1026 = vpack.c.b16 %v989, %v988
  %v1027 = vpack.c.b16 %v991, %v990
  %v1028 = vpack.c.b16 %v993, %v992
  %v1029 = vpack.c.b16 %v995, %v994
  %v1030 = vpack.c.b16 %v997, %v996
  %v1031 = vpack.c.b16 %v999, %v998
  %1064 = vmatprep.subr.bf16.mxu0 0
  %1065 = vmatpush1.bf16.msra.mxu0 %v1000
  %1066 = vmatprep.subr.bf16.mxu0 0
  %1067 = vmatpush1.bf16.msra.mxu0 %v1001
  %1068 = vmatprep.subr.bf16.mxu0 0
  %1069 = vmatpush1.bf16.msra.mxu0 %v1002
  %1070 = vmatprep.subr.bf16.mxu0 0
  %1071 = vmatpush1.bf16.msra.mxu0 %v1003
  %1072 = vmatprep.subr.bf16.mxu0 0
  %1073 = vmatpush1.bf16.msra.mxu0 %v1004
  %1074 = vmatprep.subr.bf16.mxu0 0
  %1075 = vmatpush1.bf16.msra.mxu0 %v1005
  %1076 = vmatprep.subr.bf16.mxu0 0
  %1077 = vmatpush1.bf16.msra.mxu0 %v1006
  %1078 = vmatprep.subr.bf16.mxu0 0
  %1079 = vmatpush1.bf16.msra.mxu0 %v1007
  %1080 = vmatprep.subr.bf16.mxu0 0
  %1081 = vmatpush1.bf16.msra.mxu0 %v1008
  %1082 = vmatprep.subr.bf16.mxu0 0
  %1083 = vmatpush1.bf16.msra.mxu0 %v1009
  %1084 = vmatprep.subr.bf16.mxu0 0
  %1085 = vmatpush1.bf16.msra.mxu0 %v1010
  %1086 = vmatprep.subr.bf16.mxu0 0
  %1087 = vmatpush1.bf16.msra.mxu0 %v1011
  %1088 = vmatprep.subr.bf16.mxu0 0
  %1089 = vmatpush1.bf16.msra.mxu0 %v1012
  %1090 = vmatprep.subr.bf16.mxu0 0
  %1091 = vmatpush1.bf16.msra.mxu0 %v1013
  %1092 = vmatprep.subr.bf16.mxu0 0
  %1093 = vmatpush1.bf16.msra.mxu0 %v1014
  %1094 = vmatprep.subr.bf16.mxu0 0
  %1095 = vmatpush1.bf16.msra.mxu0 %v1015
  %1096 = vmatprep.mubr.bf16.mxu0 %v798
  %1097 = vmatmul.mubr.bf16.gmra.mrb[0].mxu0 %v797
  %v1098 = vpop.f32.mrb[0].mxu0
  %v1099 = vadd.f32 %v870, %v1098
  %v1100 = vpop.f32.mrb[0].mxu0
  %v1101 = vpop.f32.mrb[0].mxu0
  %v1102 = vpop.f32.mrb[0].mxu0
  %1103 = vdwg.mxu0
  %1104 = vmatprep.subr.bf16.mxu0 0
  %1105 = vmatpush1.bf16.msra.mxu0 %v1016
  %1106 = vmatprep.subr.bf16.mxu0 0
  %1107 = vmatpush1.bf16.msra.mxu0 %v1017
  %1108 = vmatprep.subr.bf16.mxu0 0
  %1109 = vmatpush1.bf16.msra.mxu0 %v1018
  %1110 = vmatprep.subr.bf16.mxu0 0
  %1111 = vmatpush1.bf16.msra.mxu0 %v1019
  %1112 = vmatprep.subr.bf16.mxu0 0
  %1113 = vmatpush1.bf16.msra.mxu0 %v1020
  %1114 = vmatprep.subr.bf16.mxu0 0
  %1115 = vmatpush1.bf16.msra.mxu0 %v1021
  %1116 = vmatprep.subr.bf16.mxu0 0
  %1117 = vmatpush1.bf16.msra.mxu0 %v1022
  %1118 = vmatprep.subr.bf16.mxu0 0
  %1119 = vmatpush1.bf16.msra.mxu0 %v1023
  %1120 = vmatprep.subr.bf16.mxu0 0
  %1121 = vmatpush1.bf16.msra.mxu0 %v1024
  %1122 = vmatprep.subr.bf16.mxu0 0
  %1123 = vmatpush1.bf16.msra.mxu0 %v1025
  %1124 = vmatprep.subr.bf16.mxu0 0
  %1125 = vmatpush1.bf16.msra.mxu0 %v1026
  %1126 = vmatprep.subr.bf16.mxu0 0
  %1127 = vmatpush1.bf16.msra.mxu0 %v1027
  %1128 = vmatprep.subr.bf16.mxu0 0
  %1129 = vmatpush1.bf16.msra.mxu0 %v1028
  %1130 = vmatprep.subr.bf16.mxu0 0
  %1131 = vmatpush1.bf16.msra.mxu0 %v1029
  %1132 = vmatprep.subr.bf16.mxu0 0
  %1133 = vmatpush1.bf16.msra.mxu0 %v1030
  %1134 = vmatprep.subr.bf16.mxu0 0
  %1135 = vmatpush1.bf16.msra.mxu0 %v1031
  %1136 = vmatprep.mubr.bf16.mxu0 %v800
  %1137 = vmatmul.mubr.bf16.gmra.mrb[0].mxu0 %v799
  %v1138 = vpop.f32.mrb[0].mxu0
  %v1139 = vadd.f32 %v1099, %v1138
  %v1140 = vpop.f32.mrb[0].mxu0
  %v1141 = vpop.f32.mrb[0].mxu0
  %v1142 = vpop.f32.mrb[0].mxu0
  %1143 = vdwg.mxu0
  %1144 = vst [vmem:[%s7] sm:$0xff] %v1139
  // Predicated region
  $region30: #{dqn_forward.5} parent=0 // pred_check
    _
  $region31: #{dqn_forward.5} parent=0 // pred_check_branch
    %1146 = sbr.rel (0) target = $region33
  $region32: #{dqn_forward.5} parent=0 // pred_region
    _
  $region33: #{dqn_forward.5} parent=0 // pred_fallthru
    _
  // Predicated region
  $region34: #{dqn_forward.5} parent=0 // pred_check
    _
  $region35: #{dqn_forward.5} parent=0 // pred_check_branch
    %1148 = sbr.rel (0) target = $region37
  $region36: #{dqn_forward.5} parent=0 // pred_region
    _
  $region37: #{dqn_forward.5} parent=0 // pred_fallthru
    _

</llo_original>
